<compile_context>
chip_gen: v7x
topology: tpu7x:2x2x1
jax: 0.10.0
libtpu: 0.0.40
codegen_flags: <defaults>
</compile_context>

<pallas_src>
import functools
import math

import jax
import jax.numpy as jnp
from jax import lax
from jax.experimental import pallas as pl
from jax.experimental.pallas import tpu as pltpu


# --------------------------------------------------------------------------
# Fused kernel: per-batch  QKV projection -> individual attention -> out_proj
# --------------------------------------------------------------------------
def _mha_kernel(xq_ref, xk_ref, xv_ref,
                wq_ref, wk_ref, wv_ref,
                bq_ref, bk_ref, bv_ref,
                wo_ref, bo_ref,
                mask_ref, gamma_ref,
                out_ref, *rest,
                n_heads, d_k, cdt, precise, return_attn):
    if return_attn:
        attn_ref, concat_scr = rest
    else:
        attn_ref = None
        (concat_scr,) = rest

    f32 = jnp.float32
    neg_inf = f32(-1e32)
    scale = f32(1.0 / math.sqrt(d_k))

    S = mask_ref.shape[0]

    xq = xq_ref[0].astype(cdt)            # (S, D) lane-dense loads
    xk = xk_ref[0].astype(cdt)
    xv = xv_ref[0].astype(cdt)
    mask = mask_ref[...]                  # (S, S) f32, 1 = attend / 0 = masked
    keep = mask != 0.0

    # Loop-invariant S x S operators generated in-kernel (iota + compare on the
    # VPU) instead of resident VMEM constants / extra HBM DMAs.
    row = lax.broadcasted_iota(jnp.int32, (S, S), 0)
    col = lax.broadcasted_iota(jnp.int32, (S, S), 1)
    tri = (row <= col).astype(cdt)                 # cumsum-as-matmul operator
    pos = jnp.abs(col - row).astype(f32)           # position_effect |x1 - x2|

    # Full-width projections, once per batch step: (S,D)@(D,D) fills the MXU.
    q_all = jnp.dot(xq, wq_ref[...], preferred_element_type=f32) + bq_ref[...]
    k_all = jnp.dot(xk, wk_ref[...], preferred_element_type=f32) + bk_ref[...]
    v_all = jnp.dot(xv, wv_ref[...], preferred_element_type=f32) + bv_ref[...]

    def softmax_from_exp(e):
        denom = jnp.sum(e, axis=-1, keepdims=True)
        if precise:
            return e / denom
        return e * pl.reciprocal(denom, approx=True)   # EUP slot, frees VPU

    for hh in range(n_heads):             # static; n_heads is small (4-8)
        lo = hh * d_k                      # static column offsets
        q = q_all[:, lo:lo + d_k].astype(cdt)
        k = k_all[:, lo:lo + d_k].astype(cdt)
        v = v_all[:, lo:lo + d_k].astype(cdt)

        # scores = q @ k^T / sqrt(d_k)   (contract last dims, no transpose)
        scores = lax.dot_general(q, k, (((1,), (1,)), ((), ())),
                                 preferred_element_type=f32) * scale   # (S, S)

        # --- "no grad" branch: distance-aware statistics (all f32) ----------
        s_masked = jnp.where(keep, scores, neg_inf)
        m1 = jnp.max(s_masked, axis=-1, keepdims=True)
        p1 = softmax_from_exp(jnp.exp(s_masked - m1)) * mask

        # cumsum along the last axis as a matmul with the triangular operator.
        distcum = jnp.dot(p1.astype(cdt), tri, preferred_element_type=f32)
        disttotal = jnp.sum(p1, axis=-1, keepdims=True)
        dist_scores = jnp.sqrt(jnp.maximum((disttotal - distcum) * pos, 0.0))

        g = gamma_ref[hh]                  # SMEM scalar, = -softplus(gamma_h)
        total_effect = jnp.clip(jnp.exp(dist_scores * g), 1e-5, 1e5)

        # --- final attention -------------------------------------------------
        sc2 = jnp.where(keep, scores * total_effect, neg_inf)
        m2 = jnp.max(sc2, axis=-1, keepdims=True)
        attn = softmax_from_exp(jnp.exp(sc2 - m2))

        if return_attn:
            attn_ref[0, hh] = attn.astype(attn_ref.dtype)

        # dropout(attn) is identity in eval mode.
        out_h = jnp.dot(attn.astype(cdt), v, preferred_element_type=f32)
        # Write into the concat slab (static lane slice) -> no loop-carried acc.
        concat_scr[:, lo:lo + d_k] = out_h.astype(concat_scr.dtype)

    # Single full-depth output projection (K = d_model) + bias.
    out = jnp.dot(concat_scr[...], wo_ref[...], preferred_element_type=f32)
    out_ref[0] = (out + bo_ref[...]).astype(out_ref.dtype)   # lane-dense store


# --------------------------------------------------------------------------
# Generation-aware VMEM limit (v7x: 64 MiB physical; v5e/v6e: 128 MiB)
# --------------------------------------------------------------------------
def _derive_vmem_limit():
    try:
        cap = int(pltpu.get_tpu_info().vmem_capacity_bytes)
    except Exception:
        cap = 64 * 1024 * 1024           # conservative fallback
    return min(cap * 3 // 4, 100 * 1024 * 1024)


# --------------------------------------------------------------------------
# One-time parameter preparation (hoisted out of the per-call path)
# --------------------------------------------------------------------------
def prepare_params(params, n_heads, kq_same, compute_dtype=jnp.bfloat16):
    """Kernel-ready layouts: nn.Linear is y = x @ W^T + b, so store W^T once."""
    d_model = params["k_w"].shape[0]
    wq = params["k_w"] if kq_same else params["q_w"]
    bq = params["k_b"] if kq_same else params["q_b"]
    return {
        "wq_t": jnp.asarray(wq.T, compute_dtype),
        "wk_t": jnp.asarray(params["k_w"].T, compute_dtype),
        "wv_t": jnp.asarray(params["v_w"].T, compute_dtype),
        "wo_t": jnp.asarray(params["out_w"].T, compute_dtype),
        "bq": jnp.asarray(bq, jnp.float32).reshape(1, d_model),
        "bk": jnp.asarray(params["k_b"], jnp.float32).reshape(1, d_model),
        "bv": jnp.asarray(params["v_b"], jnp.float32).reshape(1, d_model),
        "bo": jnp.asarray(params["out_b"], jnp.float32).reshape(1, d_model),
        # gamma = -softplus(gammas), per-head scalars (SMEM)
        "gamma": (-jax.nn.softplus(params["gammas"])).reshape(n_heads)
                 .astype(jnp.float32),
        "compute_dtype": compute_dtype,
    }


# --------------------------------------------------------------------------
# Full module forward
# --------------------------------------------------------------------------
def mha_individual_forward(prep, q, k, v, mask, n_heads, *,
                           return_attn=True, attn_dtype=None):
    bs, S, d_model = q.shape
    assert d_model % n_heads == 0
    d_k = d_model // n_heads
    cdt = prep["compute_dtype"]
    precise = (cdt == jnp.float32)
    if attn_dtype is None:
        # bf16 attn output by default in performance mode: halves HBM/VMEM.
        attn_dtype = jnp.float32 if precise else jnp.bfloat16

    mask2d = jnp.asarray(mask, jnp.float32).reshape(S, S)   # CL4KT mask (1,1,S,S)

    kern = functools.partial(_mha_kernel, n_heads=n_heads, d_k=d_k,
                             cdt=cdt, precise=precise, return_attn=return_attn)

    row3 = lambda b: (b, 0, 0)
    const2 = lambda b: (0, 0)

    in_specs = [
        pl.BlockSpec((1, S, d_model), row3),                # x_q
        pl.BlockSpec((1, S, d_model), row3),                # x_k
        pl.BlockSpec((1, S, d_model), row3),                # x_v
        pl.BlockSpec((d_model, d_model), const2),           # Wq^T (full width)
        pl.BlockSpec((d_model, d_model), const2),           # Wk^T
        pl.BlockSpec((d_model, d_model), const2),           # Wv^T
        pl.BlockSpec((1, d_model), const2),                 # bq
        pl.BlockSpec((1, d_model), const2),                 # bk
        pl.BlockSpec((1, d_model), const2),                 # bv
        pl.BlockSpec((d_model, d_model), const2),           # Wo^T
        pl.BlockSpec((1, d_model), const2),                 # bo
        pl.BlockSpec((S, S), const2),                       # mask
        pl.BlockSpec(memory_space=pltpu.MemorySpace.SMEM),  # gamma scalars
    ]

    out_shape = [jax.ShapeDtypeStruct((bs, S, d_model), jnp.float32)]
    out_specs = [pl.BlockSpec((1, S, d_model), row3)]
    if return_attn:
        out_shape.append(jax.ShapeDtypeStruct((bs, n_heads, S, S), attn_dtype))
        out_specs.append(pl.BlockSpec((1, n_heads, S, S), lambda b: (b, 0, 0, 0)))

    results = pl.pallas_call(
        kern,
        grid=(bs,),
        out_shape=tuple(out_shape),
        in_specs=in_specs,
        out_specs=tuple(out_specs),
        scratch_shapes=[pltpu.VMEM((S, d_model), cdt)],     # concat slab
        compiler_params=pltpu.CompilerParams(
            # NOTE(v7x): bs should be even to keep both TensorCores busy.
            dimension_semantics=("parallel",),
            vmem_limit_bytes=_derive_vmem_limit()),
    )(q, k, v, prep["wq_t"], prep["wk_t"], prep["wv_t"],
      prep["bq"], prep["bk"], prep["bv"], prep["wo_t"], prep["bo"],
      mask2d, prep["gamma"])

    output = results[0]
    attn = results[1] if return_attn else None
    return output, attn


# --------------------------------------------------------------------------
# Parameter init (deterministic, shapes match the PyTorch __init__)
# --------------------------------------------------------------------------
def init_params(key, d_model, n_heads, kq_same, bias=True):
    ks = jax.random.split(key, 6)

    def xavier(kk, shape):
        fan_out, fan_in = shape
        bound = jnp.sqrt(6.0 / (fan_in + fan_out))
        return jax.random.uniform(kk, shape, jnp.float32, -bound, bound)

    params = {
        "k_w": xavier(ks[0], (d_model, d_model)),
        "k_b": jnp.zeros((d_model,), jnp.float32),
        "v_w": xavier(ks[1], (d_model, d_model)),
        "v_b": jnp.zeros((d_model,), jnp.float32),
        "out_w": xavier(ks[2], (d_model, d_model)),
        "out_b": jnp.zeros((d_model,), jnp.float32),
        # gammas: nn.Parameter(torch.zeros(n_heads,1,1)) + xavier_uniform_
        "gammas": jax.random.uniform(ks[3], (n_heads, 1, 1), jnp.float32,
                                     -jnp.sqrt(3.0), jnp.sqrt(3.0)),
    }
    if not kq_same:
        params["q_w"] = xavier(ks[4], (d_model, d_model))
        params["q_b"] = jnp.zeros((d_model,), jnp.float32)
    return params


# --------------------------------------------------------------------------
# Pure-JAX reference (mirrors the PyTorch code) for sanity checks
# --------------------------------------------------------------------------
def reference_forward(params, q, k, v, mask, n_heads, kq_same=False):
    bs, S, d_model = q.shape
    d_k = d_model // n_heads

    def lin(x, w, b):
        return x @ w.T + b

    k_p = lin(k, params["k_w"], params["k_b"])
    q_p = lin(q, params["k_w"] if kq_same else params["q_w"],
              params["k_b"] if kq_same else params["q_b"])
    v_p = lin(v, params["v_w"], params["v_b"])

    def split(x):
        return x.reshape(bs, S, n_heads, d_k).transpose(0, 2, 1, 3)

    qh, kh, vh = split(q_p), split(k_p), split(v_p)
    m = jnp.asarray(mask, jnp.float32)                     # (1,1,S,S)
    keep = m != 0

    scores = jnp.einsum("bhqd,bhkd->bhqk", qh, kh) / jnp.sqrt(jnp.float32(d_k))
    s_ = jnp.where(keep, scores, -1e32)
    s_ = jax.nn.softmax(s_, axis=-1) * m
    distcum = jnp.cumsum(s_, axis=-1)
    disttotal = jnp.sum(s_, axis=-1, keepdims=True)
    x1 = jnp.arange(S)[None, :]
    x2 = jnp.arange(S)[:, None]
    pos = jnp.abs(x1 - x2).astype(jnp.float32)[None, None]
    dist_scores = jnp.sqrt(jnp.maximum((disttotal - distcum) * pos, 0.0))
    gamma = -jax.nn.softplus(params["gammas"])[None]       # (1,h,1,1)
    total_effect = jnp.clip(jnp.exp(dist_scores * gamma), 1e-5, 1e5)
    scores = scores * total_effect
    scores = jnp.where(keep, scores, -1e32)
    attn = jax.nn.softmax(scores, axis=-1)
    out_h = jnp.einsum("bhqk,bhkd->bhqd", attn, vh)
    concat = out_h.transpose(0, 2, 1, 3).reshape(bs, S, d_model)
    output = lin(concat, params["out_w"], params["out_b"])
    return output, attn


if __name__ == "__main__":
    bs, S, d_model, n_heads = 2, 8, 32, 4
    kq_same = False

    key = jax.random.PRNGKey(0)
    kp, kq_, kk_, kv_ = jax.random.split(key, 4)
    params = init_params(kp, d_model, n_heads, kq_same)

    q = jax.random.normal(kq_, (bs, S, d_model), jnp.float32)
    k = jax.random.normal(kk_, (bs, S, d_model), jnp.float32)
    v = jax.random.normal(kv_, (bs, S, d_model), jnp.float32)
    # causal mask (1 = attend), shape (1, 1, S, S) as in CL4KT
    mask = jnp.tril(jnp.ones((S, S), jnp.float32))[None, None]

    out_expect, attn_expect = reference_forward(params, q, k, v, mask,
                                                n_heads, kq_same)

    # Kernel-ready layouts are prepared ONCE per compute dtype and reused.
    prep32 = prepare_params(params, n_heads, kq_same, compute_dtype=jnp.float32)
    prep_bf = prepare_params(params, n_heads, kq_same, compute_dtype=jnp.bfloat16)

    # 1) precise mode (f32 MXU, exact division): tight numerical check.
    out32, attn32 = mha_individual_forward(prep32, q, k, v, mask, n_heads,
                                           return_attn=True)
    out32 = jax.block_until_ready(out32)
    attn32 = jax.block_until_ready(attn32)
    assert out32.shape == (bs, S, d_model) and attn32.shape == (bs, n_heads, S, S)
    assert jnp.allclose(out32, out_expect, atol=2e-3, rtol=2e-3)
    assert jnp.allclose(attn32, attn_expect, atol=2e-3, rtol=2e-3)

    # 2) default performance mode (bf16 MXU operands, approx reciprocal,
    #    bf16 attention writeback): looser tolerance inherent to bf16.
    out_bf, attn_bf = mha_individual_forward(prep_bf, q, k, v, mask, n_heads,
                                             return_attn=True)
    out_bf = jax.block_until_ready(out_bf)
    attn_bf = jax.block_until_ready(attn_bf)
    assert attn_bf.dtype == jnp.bfloat16
    assert jnp.allclose(out_bf, out_expect, atol=1e-1, rtol=1e-1)
    assert jnp.allclose(attn_bf.astype(jnp.float32), attn_expect,
                        atol=1e-1, rtol=1e-1)

    # 3) output-only mode: skips the (bs, h, S, S) attention HBM writeback.
    out_only, no_attn = mha_individual_forward(prep32, q, k, v, mask, n_heads,
                                               return_attn=False)
    out_only = jax.block_until_ready(out_only)
    assert no_attn is None
    assert jnp.allclose(out_only, out_expect, atol=2e-3, rtol=2e-3)

    print("KERNEL_OK")
</pallas_src>

<mosaic_0001>
module attributes {stable_mosaic.version = 11 : i64} {
  func.func @_mha_kernel(%arg0: i32, %arg1: memref<1x8x32xf32, #tpu.memory_space<vmem>>, %arg2: memref<1x8x32xf32, #tpu.memory_space<vmem>>, %arg3: memref<1x8x32xf32, #tpu.memory_space<vmem>>, %arg4: memref<32x32xf32, #tpu.memory_space<vmem>>, %arg5: memref<32x32xf32, #tpu.memory_space<vmem>>, %arg6: memref<32x32xf32, #tpu.memory_space<vmem>>, %arg7: memref<1x32xf32, #tpu.memory_space<vmem>>, %arg8: memref<1x32xf32, #tpu.memory_space<vmem>>, %arg9: memref<1x32xf32, #tpu.memory_space<vmem>>, %arg10: memref<32x32xf32, #tpu.memory_space<vmem>>, %arg11: memref<1x32xf32, #tpu.memory_space<vmem>>, %arg12: memref<8x8xf32, #tpu.memory_space<vmem>>, %arg13: memref<4xf32, #tpu.memory_space<smem>>, %arg14: memref<1x8x32xf32, #tpu.memory_space<vmem>>, %arg15: memref<1x4x8x8xf32, #tpu.memory_space<vmem>>, %arg16: memref<8x32xf32, #tpu.memory_space<vmem>>) attributes {dimension_semantics = [#tpu.dimension_semantics<parallel>], iteration_bounds = array<i64: 2>, scalar_prefetch = 0 : i64, scratch_operands = 1 : i64, tpu.core_type = #tpu.core_type<tc>, window_params = [{transform_indices = @transform_0, window_bounds = array<i64: 1, 8, 32>}, {transform_indices = @transform_1, window_bounds = array<i64: 1, 8, 32>}, {transform_indices = @transform_2, window_bounds = array<i64: 1, 8, 32>}, {pipeline_mode = #tpu.pipeline_mode<synchronous>, transform_indices = @transform_3, window_bounds = array<i64: 32, 32>}, {pipeline_mode = #tpu.pipeline_mode<synchronous>, transform_indices = @transform_4, window_bounds = array<i64: 32, 32>}, {pipeline_mode = #tpu.pipeline_mode<synchronous>, transform_indices = @transform_5, window_bounds = array<i64: 32, 32>}, {pipeline_mode = #tpu.pipeline_mode<synchronous>, transform_indices = @transform_6, window_bounds = array<i64: 1, 32>}, {pipeline_mode = #tpu.pipeline_mode<synchronous>, transform_indices = @transform_7, window_bounds = array<i64: 1, 32>}, {pipeline_mode = #tpu.pipeline_mode<synchronous>, transform_indices = @transform_8, window_bounds = array<i64: 1, 32>}, {pipeline_mode = #tpu.pipeline_mode<synchronous>, transform_indices = @transform_9, window_bounds = array<i64: 32, 32>}, {pipeline_mode = #tpu.pipeline_mode<synchronous>, transform_indices = @transform_10, window_bounds = array<i64: 1, 32>}, {pipeline_mode = #tpu.pipeline_mode<synchronous>, transform_indices = @transform_11, window_bounds = array<i64: 8, 8>}, {transform_indices = @transform_12, window_bounds = array<i64: 4>}, {transform_indices = @transform_13, window_bounds = array<i64: 1, 8, 32>}, {transform_indices = @transform_14, window_bounds = array<i64: 1, 4, 8, 8>}]} {
    %c0 = arith.constant 0 : index
    %c0_0 = arith.constant 0 : index
    %c0_1 = arith.constant 0 : index
    %0 = vector.load %arg1[%c0, %c0_0, %c0_1] : memref<1x8x32xf32, #tpu.memory_space<vmem>>, vector<1x8x32xf32>
    %1 = vector.shape_cast %0 : vector<1x8x32xf32> to vector<8x32xf32>
    %c0_2 = arith.constant 0 : index
    %c0_3 = arith.constant 0 : index
    %c0_4 = arith.constant 0 : index
    %2 = vector.load %arg2[%c0_2, %c0_3, %c0_4] : memref<1x8x32xf32, #tpu.memory_space<vmem>>, vector<1x8x32xf32>
    %3 = vector.shape_cast %2 : vector<1x8x32xf32> to vector<8x32xf32>
    %c0_5 = arith.constant 0 : index
    %c0_6 = arith.constant 0 : index
    %c0_7 = arith.constant 0 : index
    %4 = vector.load %arg3[%c0_5, %c0_6, %c0_7] : memref<1x8x32xf32, #tpu.memory_space<vmem>>, vector<1x8x32xf32>
    %5 = vector.shape_cast %4 : vector<1x8x32xf32> to vector<8x32xf32>
    %c0_8 = arith.constant 0 : index
    %c0_9 = arith.constant 0 : index
    %6 = vector.load %arg12[%c0_8, %c0_9] : memref<8x8xf32, #tpu.memory_space<vmem>>, vector<8x8xf32>
    %cst = arith.constant 0.000000e+00 : f32
    %7 = vector.broadcast %cst : f32 to vector<8x8xf32>
    %8 = arith.cmpf one, %6, %7 : vector<8x8xf32>
    %9 = tpu.iota {dimensions = array<i32: 0>} : vector<8x8xi32>
    %10 = tpu.iota {dimensions = array<i32: 1>} : vector<8x8xi32>
    %11 = arith.cmpi sle, %9, %10 : vector<8x8xi32>
    %12 = arith.extui %11 : vector<8x8xi1> to vector<8x8xi32>
    %13 = arith.sitofp %12 : vector<8x8xi32> to vector<8x8xf32>
    %14 = arith.subi %10, %9 : vector<8x8xi32>
    %15 = math.absi %14 : vector<8x8xi32>
    %16 = arith.sitofp %15 : vector<8x8xi32> to vector<8x8xf32>
    %c0_10 = arith.constant 0 : index
    %c0_11 = arith.constant 0 : index
    %17 = vector.load %arg4[%c0_10, %c0_11] : memref<32x32xf32, #tpu.memory_space<vmem>>, vector<32x32xf32>
    %cst_12 = arith.constant dense<0.000000e+00> : vector<8x32xf32>
    %18 = tpu.matmul %1, %17, %cst_12 {dimension_numbers = #tpu.dot_dimension_numbers<[1], [0], [0], [1], [0, 0, 1, 1], [], []>} : vector<8x32xf32>, vector<32x32xf32>, vector<8x32xf32> -> vector<8x32xf32>
    %c0_13 = arith.constant 0 : index
    %c0_14 = arith.constant 0 : index
    %19 = vector.load %arg7[%c0_13, %c0_14] : memref<1x32xf32, #tpu.memory_space<vmem>>, vector<1x32xf32>
    %20 = vector.broadcast %19 : vector<1x32xf32> to vector<8x32xf32>
    %21 = arith.addf %18, %20 : vector<8x32xf32>
    %c0_15 = arith.constant 0 : index
    %c0_16 = arith.constant 0 : index
    %22 = vector.load %arg5[%c0_15, %c0_16] : memref<32x32xf32, #tpu.memory_space<vmem>>, vector<32x32xf32>
    %cst_17 = arith.constant dense<0.000000e+00> : vector<8x32xf32>
    %23 = tpu.matmul %3, %22, %cst_17 {dimension_numbers = #tpu.dot_dimension_numbers<[1], [0], [0], [1], [0, 0, 1, 1], [], []>} : vector<8x32xf32>, vector<32x32xf32>, vector<8x32xf32> -> vector<8x32xf32>
    %c0_18 = arith.constant 0 : index
    %c0_19 = arith.constant 0 : index
    %24 = vector.load %arg8[%c0_18, %c0_19] : memref<1x32xf32, #tpu.memory_space<vmem>>, vector<1x32xf32>
    %25 = vector.broadcast %24 : vector<1x32xf32> to vector<8x32xf32>
    %26 = arith.addf %23, %25 : vector<8x32xf32>
    %c0_20 = arith.constant 0 : index
    %c0_21 = arith.constant 0 : index
    %27 = vector.load %arg6[%c0_20, %c0_21] : memref<32x32xf32, #tpu.memory_space<vmem>>, vector<32x32xf32>
    %cst_22 = arith.constant dense<0.000000e+00> : vector<8x32xf32>
    %28 = tpu.matmul %5, %27, %cst_22 {dimension_numbers = #tpu.dot_dimension_numbers<[1], [0], [0], [1], [0, 0, 1, 1], [], []>} : vector<8x32xf32>, vector<32x32xf32>, vector<8x32xf32> -> vector<8x32xf32>
    %c0_23 = arith.constant 0 : index
    %c0_24 = arith.constant 0 : index
    %29 = vector.load %arg9[%c0_23, %c0_24] : memref<1x32xf32, #tpu.memory_space<vmem>>, vector<1x32xf32>
    %30 = vector.broadcast %29 : vector<1x32xf32> to vector<8x32xf32>
    %31 = arith.addf %28, %30 : vector<8x32xf32>
    %32 = vector.extract_strided_slice %21 {offsets = [0, 0], sizes = [8, 8], strides = [1, 1]} : vector<8x32xf32> to vector<8x8xf32>
    %33 = vector.extract_strided_slice %26 {offsets = [0, 0], sizes = [8, 8], strides = [1, 1]} : vector<8x32xf32> to vector<8x8xf32>
    %34 = vector.extract_strided_slice %31 {offsets = [0, 0], sizes = [8, 8], strides = [1, 1]} : vector<8x32xf32> to vector<8x8xf32>
    %cst_25 = arith.constant dense<0.000000e+00> : vector<8x8xf32>
    %35 = tpu.matmul %32, %33, %cst_25 {dimension_numbers = #tpu.dot_dimension_numbers<[1], [1], [0], [0], [0, 0, 1, 0], [], []>} : vector<8x8xf32>, vector<8x8xf32>, vector<8x8xf32> -> vector<8x8xf32>
    %cst_26 = arith.constant 0.353553385 : f32
    %36 = vector.broadcast %cst_26 : f32 to vector<8x8xf32>
    %37 = arith.mulf %35, %36 : vector<8x8xf32>
    %cst_27 = arith.constant -1.000000e+32 : f32
    %38 = vector.broadcast %cst_27 : f32 to vector<8x8xf32>
    %39 = arith.select %8, %37, %38 : vector<8x8xi1>, vector<8x8xf32>
    %cst_28 = arith.constant dense<0xFF800000> : vector<8xf32>
    %40 = vector.multi_reduction <maximumf>, %39, %cst_28 [1] : vector<8x8xf32> to vector<8xf32>
    %41 = vector.shape_cast %40 : vector<8xf32> to vector<8x1xf32>
    %42 = vector.broadcast %41 : vector<8x1xf32> to vector<8x8xf32>
    %43 = arith.subf %39, %42 : vector<8x8xf32>
    %44 = math.exp %43 : vector<8x8xf32>
    %cst_29 = arith.constant dense<0.000000e+00> : vector<8xf32>
    %45 = vector.multi_reduction <add>, %44, %cst_29 [1] : vector<8x8xf32> to vector<8xf32>
    %46 = vector.shape_cast %45 : vector<8xf32> to vector<8x1xf32>
    %47 = vector.broadcast %46 : vector<8x1xf32> to vector<8x8xf32>
    %48 = arith.divf %44, %47 : vector<8x8xf32>
    %49 = arith.mulf %48, %6 : vector<8x8xf32>
    %cst_30 = arith.constant dense<0.000000e+00> : vector<8x8xf32>
    %50 = tpu.matmul %49, %13, %cst_30 {dimension_numbers = #tpu.dot_dimension_numbers<[1], [0], [0], [1], [0, 0, 1, 1], [], []>} : vector<8x8xf32>, vector<8x8xf32>, vector<8x8xf32> -> vector<8x8xf32>
    %cst_31 = arith.constant dense<0.000000e+00> : vector<8xf32>
    %51 = vector.multi_reduction <add>, %49, %cst_31 [1] : vector<8x8xf32> to vector<8xf32>
    %52 = vector.shape_cast %51 : vector<8xf32> to vector<8x1xf32>
    %53 = vector.broadcast %52 : vector<8x1xf32> to vector<8x8xf32>
    %54 = arith.subf %53, %50 : vector<8x8xf32>
    %55 = arith.mulf %54, %16 : vector<8x8xf32>
    %cst_32 = arith.constant 0.000000e+00 : f32
    %56 = vector.broadcast %cst_32 : f32 to vector<8x8xf32>
    %57 = arith.maximumf %55, %56 : vector<8x8xf32>
    %58 = math.sqrt %57 : vector<8x8xf32>
    %c0_33 = arith.constant 0 : index
    %59 = memref.load %arg13[%c0_33] : memref<4xf32, #tpu.memory_space<smem>>
    %60 = vector.broadcast %59 : f32 to vector<8x8xf32>
    %61 = arith.mulf %58, %60 : vector<8x8xf32>
    %62 = math.exp %61 : vector<8x8xf32>
    %cst_34 = arith.constant 9.99999974E-6 : f32
    %cst_35 = arith.constant 1.000000e+05 : f32
    %63 = vector.broadcast %cst_34 : f32 to vector<8x8xf32>
    %64 = arith.maximumf %63, %62 : vector<8x8xf32>
    %65 = vector.broadcast %cst_35 : f32 to vector<8x8xf32>
    %66 = arith.minimumf %65, %64 : vector<8x8xf32>
    %67 = arith.mulf %37, %66 : vector<8x8xf32>
    %cst_36 = arith.constant -1.000000e+32 : f32
    %68 = vector.broadcast %cst_36 : f32 to vector<8x8xf32>
    %69 = arith.select %8, %67, %68 : vector<8x8xi1>, vector<8x8xf32>
    %cst_37 = arith.constant dense<0xFF800000> : vector<8xf32>
    %70 = vector.multi_reduction <maximumf>, %69, %cst_37 [1] : vector<8x8xf32> to vector<8xf32>
    %71 = vector.shape_cast %70 : vector<8xf32> to vector<8x1xf32>
    %72 = vector.broadcast %71 : vector<8x1xf32> to vector<8x8xf32>
    %73 = arith.subf %69, %72 : vector<8x8xf32>
    %74 = math.exp %73 : vector<8x8xf32>
    %cst_38 = arith.constant dense<0.000000e+00> : vector<8xf32>
    %75 = vector.multi_reduction <add>, %74, %cst_38 [1] : vector<8x8xf32> to vector<8xf32>
    %76 = vector.shape_cast %75 : vector<8xf32> to vector<8x1xf32>
    %77 = vector.broadcast %76 : vector<8x1xf32> to vector<8x8xf32>
    %78 = arith.divf %74, %77 : vector<8x8xf32>
    %c0_39 = arith.constant 0 : index
    %c0_40 = arith.constant 0 : index
    %c0_41 = arith.constant 0 : index
    %c0_42 = arith.constant 0 : index
    %79 = vector.load %arg15[%c0_39, %c0_40, %c0_41, %c0_42] : memref<1x4x8x8xf32, #tpu.memory_space<vmem>>, vector<1x1x8x8xf32>
    %80 = vector.shape_cast %79 : vector<1x1x8x8xf32> to vector<8x8xf32>
    %81 = vector.shape_cast %78 : vector<8x8xf32> to vector<1x1x8x8xf32>
    tpu.vector_store %arg15[%c0_39, %c0_40, %c0_41, %c0_42], %81 {strides = array<i32>} : memref<1x4x8x8xf32, #tpu.memory_space<vmem>>, vector<1x1x8x8xf32>,
    %cst_43 = arith.constant dense<0.000000e+00> : vector<8x8xf32>
    %82 = tpu.matmul %78, %34, %cst_43 {dimension_numbers = #tpu.dot_dimension_numbers<[1], [0], [0], [1], [0, 0, 1, 1], [], []>} : vector<8x8xf32>, vector<8x8xf32>, vector<8x8xf32> -> vector<8x8xf32>
    %c0_44 = arith.constant 0 : index
    %c0_45 = arith.constant 0 : index
    %83 = vector.load %arg16[%c0_44, %c0_45] : memref<8x32xf32, #tpu.memory_space<vmem>>, vector<8x8xf32>
    tpu.vector_store %arg16[%c0_44, %c0_45], %82 {strides = array<i32>} : memref<8x32xf32, #tpu.memory_space<vmem>>, vector<8x8xf32>,
    %84 = vector.extract_strided_slice %21 {offsets = [0, 8], sizes = [8, 8], strides = [1, 1]} : vector<8x32xf32> to vector<8x8xf32>
    %85 = vector.extract_strided_slice %26 {offsets = [0, 8], sizes = [8, 8], strides = [1, 1]} : vector<8x32xf32> to vector<8x8xf32>
    %86 = vector.extract_strided_slice %31 {offsets = [0, 8], sizes = [8, 8], strides = [1, 1]} : vector<8x32xf32> to vector<8x8xf32>
    %cst_46 = arith.constant dense<0.000000e+00> : vector<8x8xf32>
    %87 = tpu.matmul %84, %85, %cst_46 {dimension_numbers = #tpu.dot_dimension_numbers<[1], [1], [0], [0], [0, 0, 1, 0], [], []>} : vector<8x8xf32>, vector<8x8xf32>, vector<8x8xf32> -> vector<8x8xf32>
    %cst_47 = arith.constant 0.353553385 : f32
    %88 = vector.broadcast %cst_47 : f32 to vector<8x8xf32>
    %89 = arith.mulf %87, %88 : vector<8x8xf32>
    %cst_48 = arith.constant -1.000000e+32 : f32
    %90 = vector.broadcast %cst_48 : f32 to vector<8x8xf32>
    %91 = arith.select %8, %89, %90 : vector<8x8xi1>, vector<8x8xf32>
    %cst_49 = arith.constant dense<0xFF800000> : vector<8xf32>
    %92 = vector.multi_reduction <maximumf>, %91, %cst_49 [1] : vector<8x8xf32> to vector<8xf32>
    %93 = vector.shape_cast %92 : vector<8xf32> to vector<8x1xf32>
    %94 = vector.broadcast %93 : vector<8x1xf32> to vector<8x8xf32>
    %95 = arith.subf %91, %94 : vector<8x8xf32>
    %96 = math.exp %95 : vector<8x8xf32>
    %cst_50 = arith.constant dense<0.000000e+00> : vector<8xf32>
    %97 = vector.multi_reduction <add>, %96, %cst_50 [1] : vector<8x8xf32> to vector<8xf32>
    %98 = vector.shape_cast %97 : vector<8xf32> to vector<8x1xf32>
    %99 = vector.broadcast %98 : vector<8x1xf32> to vector<8x8xf32>
    %100 = arith.divf %96, %99 : vector<8x8xf32>
    %101 = arith.mulf %100, %6 : vector<8x8xf32>
    %cst_51 = arith.constant dense<0.000000e+00> : vector<8x8xf32>
    %102 = tpu.matmul %101, %13, %cst_51 {dimension_numbers = #tpu.dot_dimension_numbers<[1], [0], [0], [1], [0, 0, 1, 1], [], []>} : vector<8x8xf32>, vector<8x8xf32>, vector<8x8xf32> -> vector<8x8xf32>
    %cst_52 = arith.constant dense<0.000000e+00> : vector<8xf32>
    %103 = vector.multi_reduction <add>, %101, %cst_52 [1] : vector<8x8xf32> to vector<8xf32>
    %104 = vector.shape_cast %103 : vector<8xf32> to vector<8x1xf32>
    %105 = vector.broadcast %104 : vector<8x1xf32> to vector<8x8xf32>
    %106 = arith.subf %105, %102 : vector<8x8xf32>
    %107 = arith.mulf %106, %16 : vector<8x8xf32>
    %cst_53 = arith.constant 0.000000e+00 : f32
    %108 = vector.broadcast %cst_53 : f32 to vector<8x8xf32>
    %109 = arith.maximumf %107, %108 : vector<8x8xf32>
    %110 = math.sqrt %109 : vector<8x8xf32>
    %c1 = arith.constant 1 : index
    %111 = memref.load %arg13[%c1] : memref<4xf32, #tpu.memory_space<smem>>
    %112 = vector.broadcast %111 : f32 to vector<8x8xf32>
    %113 = arith.mulf %110, %112 : vector<8x8xf32>
    %114 = math.exp %113 : vector<8x8xf32>
    %cst_54 = arith.constant 9.99999974E-6 : f32
    %cst_55 = arith.constant 1.000000e+05 : f32
    %115 = vector.broadcast %cst_54 : f32 to vector<8x8xf32>
    %116 = arith.maximumf %115, %114 : vector<8x8xf32>
    %117 = vector.broadcast %cst_55 : f32 to vector<8x8xf32>
    %118 = arith.minimumf %117, %116 : vector<8x8xf32>
    %119 = arith.mulf %89, %118 : vector<8x8xf32>
    %cst_56 = arith.constant -1.000000e+32 : f32
    %120 = vector.broadcast %cst_56 : f32 to vector<8x8xf32>
    %121 = arith.select %8, %119, %120 : vector<8x8xi1>, vector<8x8xf32>
    %cst_57 = arith.constant dense<0xFF800000> : vector<8xf32>
    %122 = vector.multi_reduction <maximumf>, %121, %cst_57 [1] : vector<8x8xf32> to vector<8xf32>
    %123 = vector.shape_cast %122 : vector<8xf32> to vector<8x1xf32>
    %124 = vector.broadcast %123 : vector<8x1xf32> to vector<8x8xf32>
    %125 = arith.subf %121, %124 : vector<8x8xf32>
    %126 = math.exp %125 : vector<8x8xf32>
    %cst_58 = arith.constant dense<0.000000e+00> : vector<8xf32>
    %127 = vector.multi_reduction <add>, %126, %cst_58 [1] : vector<8x8xf32> to vector<8xf32>
    %128 = vector.shape_cast %127 : vector<8xf32> to vector<8x1xf32>
    %129 = vector.broadcast %128 : vector<8x1xf32> to vector<8x8xf32>
    %130 = arith.divf %126, %129 : vector<8x8xf32>
    %c0_59 = arith.constant 0 : index
    %c1_60 = arith.constant 1 : index
    %c0_61 = arith.constant 0 : index
    %c0_62 = arith.constant 0 : index
    %131 = vector.load %arg15[%c0_59, %c1_60, %c0_61, %c0_62] : memref<1x4x8x8xf32, #tpu.memory_space<vmem>>, vector<1x1x8x8xf32>
    %132 = vector.shape_cast %131 : vector<1x1x8x8xf32> to vector<8x8xf32>
    %133 = vector.shape_cast %130 : vector<8x8xf32> to vector<1x1x8x8xf32>
    tpu.vector_store %arg15[%c0_59, %c1_60, %c0_61, %c0_62], %133 {strides = array<i32>} : memref<1x4x8x8xf32, #tpu.memory_space<vmem>>, vector<1x1x8x8xf32>,
    %cst_63 = arith.constant dense<0.000000e+00> : vector<8x8xf32>
    %134 = tpu.matmul %130, %86, %cst_63 {dimension_numbers = #tpu.dot_dimension_numbers<[1], [0], [0], [1], [0, 0, 1, 1], [], []>} : vector<8x8xf32>, vector<8x8xf32>, vector<8x8xf32> -> vector<8x8xf32>
    %c0_64 = arith.constant 0 : index
    %c8 = arith.constant 8 : index
    %135 = vector.load %arg16[%c0_64, %c8] : memref<8x32xf32, #tpu.memory_space<vmem>>, vector<8x8xf32>
    tpu.vector_store %arg16[%c0_64, %c8], %134 {strides = array<i32>} : memref<8x32xf32, #tpu.memory_space<vmem>>, vector<8x8xf32>,
    %136 = vector.extract_strided_slice %21 {offsets = [0, 16], sizes = [8, 8], strides = [1, 1]} : vector<8x32xf32> to vector<8x8xf32>
    %137 = vector.extract_strided_slice %26 {offsets = [0, 16], sizes = [8, 8], strides = [1, 1]} : vector<8x32xf32> to vector<8x8xf32>
    %138 = vector.extract_strided_slice %31 {offsets = [0, 16], sizes = [8, 8], strides = [1, 1]} : vector<8x32xf32> to vector<8x8xf32>
    %cst_65 = arith.constant dense<0.000000e+00> : vector<8x8xf32>
    %139 = tpu.matmul %136, %137, %cst_65 {dimension_numbers = #tpu.dot_dimension_numbers<[1], [1], [0], [0], [0, 0, 1, 0], [], []>} : vector<8x8xf32>, vector<8x8xf32>, vector<8x8xf32> -> vector<8x8xf32>
    %cst_66 = arith.constant 0.353553385 : f32
    %140 = vector.broadcast %cst_66 : f32 to vector<8x8xf32>
    %141 = arith.mulf %139, %140 : vector<8x8xf32>
    %cst_67 = arith.constant -1.000000e+32 : f32
    %142 = vector.broadcast %cst_67 : f32 to vector<8x8xf32>
    %143 = arith.select %8, %141, %142 : vector<8x8xi1>, vector<8x8xf32>
    %cst_68 = arith.constant dense<0xFF800000> : vector<8xf32>
    %144 = vector.multi_reduction <maximumf>, %143, %cst_68 [1] : vector<8x8xf32> to vector<8xf32>
    %145 = vector.shape_cast %144 : vector<8xf32> to vector<8x1xf32>
    %146 = vector.broadcast %145 : vector<8x1xf32> to vector<8x8xf32>
    %147 = arith.subf %143, %146 : vector<8x8xf32>
    %148 = math.exp %147 : vector<8x8xf32>
    %cst_69 = arith.constant dense<0.000000e+00> : vector<8xf32>
    %149 = vector.multi_reduction <add>, %148, %cst_69 [1] : vector<8x8xf32> to vector<8xf32>
    %150 = vector.shape_cast %149 : vector<8xf32> to vector<8x1xf32>
    %151 = vector.broadcast %150 : vector<8x1xf32> to vector<8x8xf32>
    %152 = arith.divf %148, %151 : vector<8x8xf32>
    %153 = arith.mulf %152, %6 : vector<8x8xf32>
    %cst_70 = arith.constant dense<0.000000e+00> : vector<8x8xf32>
    %154 = tpu.matmul %153, %13, %cst_70 {dimension_numbers = #tpu.dot_dimension_numbers<[1], [0], [0], [1], [0, 0, 1, 1], [], []>} : vector<8x8xf32>, vector<8x8xf32>, vector<8x8xf32> -> vector<8x8xf32>
    %cst_71 = arith.constant dense<0.000000e+00> : vector<8xf32>
    %155 = vector.multi_reduction <add>, %153, %cst_71 [1] : vector<8x8xf32> to vector<8xf32>
    %156 = vector.shape_cast %155 : vector<8xf32> to vector<8x1xf32>
    %157 = vector.broadcast %156 : vector<8x1xf32> to vector<8x8xf32>
    %158 = arith.subf %157, %154 : vector<8x8xf32>
    %159 = arith.mulf %158, %16 : vector<8x8xf32>
    %cst_72 = arith.constant 0.000000e+00 : f32
    %160 = vector.broadcast %cst_72 : f32 to vector<8x8xf32>
    %161 = arith.maximumf %159, %160 : vector<8x8xf32>
    %162 = math.sqrt %161 : vector<8x8xf32>
    %c2 = arith.constant 2 : index
    %163 = memref.load %arg13[%c2] : memref<4xf32, #tpu.memory_space<smem>>
    %164 = vector.broadcast %163 : f32 to vector<8x8xf32>
    %165 = arith.mulf %162, %164 : vector<8x8xf32>
    %166 = math.exp %165 : vector<8x8xf32>
    %cst_73 = arith.constant 9.99999974E-6 : f32
    %cst_74 = arith.constant 1.000000e+05 : f32
    %167 = vector.broadcast %cst_73 : f32 to vector<8x8xf32>
    %168 = arith.maximumf %167, %166 : vector<8x8xf32>
    %169 = vector.broadcast %cst_74 : f32 to vector<8x8xf32>
    %170 = arith.minimumf %169, %168 : vector<8x8xf32>
    %171 = arith.mulf %141, %170 : vector<8x8xf32>
    %cst_75 = arith.constant -1.000000e+32 : f32
    %172 = vector.broadcast %cst_75 : f32 to vector<8x8xf32>
    %173 = arith.select %8, %171, %172 : vector<8x8xi1>, vector<8x8xf32>
    %cst_76 = arith.constant dense<0xFF800000> : vector<8xf32>
    %174 = vector.multi_reduction <maximumf>, %173, %cst_76 [1] : vector<8x8xf32> to vector<8xf32>
    %175 = vector.shape_cast %174 : vector<8xf32> to vector<8x1xf32>
    %176 = vector.broadcast %175 : vector<8x1xf32> to vector<8x8xf32>
    %177 = arith.subf %173, %176 : vector<8x8xf32>
    %178 = math.exp %177 : vector<8x8xf32>
    %cst_77 = arith.constant dense<0.000000e+00> : vector<8xf32>
    %179 = vector.multi_reduction <add>, %178, %cst_77 [1] : vector<8x8xf32> to vector<8xf32>
    %180 = vector.shape_cast %179 : vector<8xf32> to vector<8x1xf32>
    %181 = vector.broadcast %180 : vector<8x1xf32> to vector<8x8xf32>
    %182 = arith.divf %178, %181 : vector<8x8xf32>
    %c0_78 = arith.constant 0 : index
    %c2_79 = arith.constant 2 : index
    %c0_80 = arith.constant 0 : index
    %c0_81 = arith.constant 0 : index
    %183 = vector.load %arg15[%c0_78, %c2_79, %c0_80, %c0_81] : memref<1x4x8x8xf32, #tpu.memory_space<vmem>>, vector<1x1x8x8xf32>
    %184 = vector.shape_cast %183 : vector<1x1x8x8xf32> to vector<8x8xf32>
    %185 = vector.shape_cast %182 : vector<8x8xf32> to vector<1x1x8x8xf32>
    tpu.vector_store %arg15[%c0_78, %c2_79, %c0_80, %c0_81], %185 {strides = array<i32>} : memref<1x4x8x8xf32, #tpu.memory_space<vmem>>, vector<1x1x8x8xf32>,
    %cst_82 = arith.constant dense<0.000000e+00> : vector<8x8xf32>
    %186 = tpu.matmul %182, %138, %cst_82 {dimension_numbers = #tpu.dot_dimension_numbers<[1], [0], [0], [1], [0, 0, 1, 1], [], []>} : vector<8x8xf32>, vector<8x8xf32>, vector<8x8xf32> -> vector<8x8xf32>
    %c0_83 = arith.constant 0 : index
    %c16 = arith.constant 16 : index
    %187 = vector.load %arg16[%c0_83, %c16] : memref<8x32xf32, #tpu.memory_space<vmem>>, vector<8x8xf32>
    tpu.vector_store %arg16[%c0_83, %c16], %186 {strides = array<i32>} : memref<8x32xf32, #tpu.memory_space<vmem>>, vector<8x8xf32>,
    %188 = vector.extract_strided_slice %21 {offsets = [0, 24], sizes = [8, 8], strides = [1, 1]} : vector<8x32xf32> to vector<8x8xf32>
    %189 = vector.extract_strided_slice %26 {offsets = [0, 24], sizes = [8, 8], strides = [1, 1]} : vector<8x32xf32> to vector<8x8xf32>
    %190 = vector.extract_strided_slice %31 {offsets = [0, 24], sizes = [8, 8], strides = [1, 1]} : vector<8x32xf32> to vector<8x8xf32>
    %cst_84 = arith.constant dense<0.000000e+00> : vector<8x8xf32>
    %191 = tpu.matmul %188, %189, %cst_84 {dimension_numbers = #tpu.dot_dimension_numbers<[1], [1], [0], [0], [0, 0, 1, 0], [], []>} : vector<8x8xf32>, vector<8x8xf32>, vector<8x8xf32> -> vector<8x8xf32>
    %cst_85 = arith.constant 0.353553385 : f32
    %192 = vector.broadcast %cst_85 : f32 to vector<8x8xf32>
    %193 = arith.mulf %191, %192 : vector<8x8xf32>
    %cst_86 = arith.constant -1.000000e+32 : f32
    %194 = vector.broadcast %cst_86 : f32 to vector<8x8xf32>
    %195 = arith.select %8, %193, %194 : vector<8x8xi1>, vector<8x8xf32>
    %cst_87 = arith.constant dense<0xFF800000> : vector<8xf32>
    %196 = vector.multi_reduction <maximumf>, %195, %cst_87 [1] : vector<8x8xf32> to vector<8xf32>
    %197 = vector.shape_cast %196 : vector<8xf32> to vector<8x1xf32>
    %198 = vector.broadcast %197 : vector<8x1xf32> to vector<8x8xf32>
    %199 = arith.subf %195, %198 : vector<8x8xf32>
    %200 = math.exp %199 : vector<8x8xf32>
    %cst_88 = arith.constant dense<0.000000e+00> : vector<8xf32>
    %201 = vector.multi_reduction <add>, %200, %cst_88 [1] : vector<8x8xf32> to vector<8xf32>
    %202 = vector.shape_cast %201 : vector<8xf32> to vector<8x1xf32>
    %203 = vector.broadcast %202 : vector<8x1xf32> to vector<8x8xf32>
    %204 = arith.divf %200, %203 : vector<8x8xf32>
    %205 = arith.mulf %204, %6 : vector<8x8xf32>
    %cst_89 = arith.constant dense<0.000000e+00> : vector<8x8xf32>
    %206 = tpu.matmul %205, %13, %cst_89 {dimension_numbers = #tpu.dot_dimension_numbers<[1], [0], [0], [1], [0, 0, 1, 1], [], []>} : vector<8x8xf32>, vector<8x8xf32>, vector<8x8xf32> -> vector<8x8xf32>
    %cst_90 = arith.constant dense<0.000000e+00> : vector<8xf32>
    %207 = vector.multi_reduction <add>, %205, %cst_90 [1] : vector<8x8xf32> to vector<8xf32>
    %208 = vector.shape_cast %207 : vector<8xf32> to vector<8x1xf32>
    %209 = vector.broadcast %208 : vector<8x1xf32> to vector<8x8xf32>
    %210 = arith.subf %209, %206 : vector<8x8xf32>
    %211 = arith.mulf %210, %16 : vector<8x8xf32>
    %cst_91 = arith.constant 0.000000e+00 : f32
    %212 = vector.broadcast %cst_91 : f32 to vector<8x8xf32>
    %213 = arith.maximumf %211, %212 : vector<8x8xf32>
    %214 = math.sqrt %213 : vector<8x8xf32>
    %c3 = arith.constant 3 : index
    %215 = memref.load %arg13[%c3] : memref<4xf32, #tpu.memory_space<smem>>
    %216 = vector.broadcast %215 : f32 to vector<8x8xf32>
    %217 = arith.mulf %214, %216 : vector<8x8xf32>
    %218 = math.exp %217 : vector<8x8xf32>
    %cst_92 = arith.constant 9.99999974E-6 : f32
    %cst_93 = arith.constant 1.000000e+05 : f32
    %219 = vector.broadcast %cst_92 : f32 to vector<8x8xf32>
    %220 = arith.maximumf %219, %218 : vector<8x8xf32>
    %221 = vector.broadcast %cst_93 : f32 to vector<8x8xf32>
    %222 = arith.minimumf %221, %220 : vector<8x8xf32>
    %223 = arith.mulf %193, %222 : vector<8x8xf32>
    %cst_94 = arith.constant -1.000000e+32 : f32
    %224 = vector.broadcast %cst_94 : f32 to vector<8x8xf32>
    %225 = arith.select %8, %223, %224 : vector<8x8xi1>, vector<8x8xf32>
    %cst_95 = arith.constant dense<0xFF800000> : vector<8xf32>
    %226 = vector.multi_reduction <maximumf>, %225, %cst_95 [1] : vector<8x8xf32> to vector<8xf32>
    %227 = vector.shape_cast %226 : vector<8xf32> to vector<8x1xf32>
    %228 = vector.broadcast %227 : vector<8x1xf32> to vector<8x8xf32>
    %229 = arith.subf %225, %228 : vector<8x8xf32>
    %230 = math.exp %229 : vector<8x8xf32>
    %cst_96 = arith.constant dense<0.000000e+00> : vector<8xf32>
    %231 = vector.multi_reduction <add>, %230, %cst_96 [1] : vector<8x8xf32> to vector<8xf32>
    %232 = vector.shape_cast %231 : vector<8xf32> to vector<8x1xf32>
    %233 = vector.broadcast %232 : vector<8x1xf32> to vector<8x8xf32>
    %234 = arith.divf %230, %233 : vector<8x8xf32>
    %c0_97 = arith.constant 0 : index
    %c3_98 = arith.constant 3 : index
    %c0_99 = arith.constant 0 : index
    %c0_100 = arith.constant 0 : index
    %235 = vector.load %arg15[%c0_97, %c3_98, %c0_99, %c0_100] : memref<1x4x8x8xf32, #tpu.memory_space<vmem>>, vector<1x1x8x8xf32>
    %236 = vector.shape_cast %235 : vector<1x1x8x8xf32> to vector<8x8xf32>
    %237 = vector.shape_cast %234 : vector<8x8xf32> to vector<1x1x8x8xf32>
    tpu.vector_store %arg15[%c0_97, %c3_98, %c0_99, %c0_100], %237 {strides = array<i32>} : memref<1x4x8x8xf32, #tpu.memory_space<vmem>>, vector<1x1x8x8xf32>,
    %cst_101 = arith.constant dense<0.000000e+00> : vector<8x8xf32>
    %238 = tpu.matmul %234, %190, %cst_101 {dimension_numbers = #tpu.dot_dimension_numbers<[1], [0], [0], [1], [0, 0, 1, 1], [], []>} : vector<8x8xf32>, vector<8x8xf32>, vector<8x8xf32> -> vector<8x8xf32>
    %c0_102 = arith.constant 0 : index
    %c24 = arith.constant 24 : index
    %239 = vector.load %arg16[%c0_102, %c24] : memref<8x32xf32, #tpu.memory_space<vmem>>, vector<8x8xf32>
    tpu.vector_store %arg16[%c0_102, %c24], %238 {strides = array<i32>} : memref<8x32xf32, #tpu.memory_space<vmem>>, vector<8x8xf32>,
    %c0_103 = arith.constant 0 : index
    %c0_104 = arith.constant 0 : index
    %240 = vector.load %arg16[%c0_103, %c0_104] : memref<8x32xf32, #tpu.memory_space<vmem>>, vector<8x32xf32>
    %c0_105 = arith.constant 0 : index
    %c0_106 = arith.constant 0 : index
    %241 = vector.load %arg10[%c0_105, %c0_106] : memref<32x32xf32, #tpu.memory_space<vmem>>, vector<32x32xf32>
    %cst_107 = arith.constant dense<0.000000e+00> : vector<8x32xf32>
    %242 = tpu.matmul %240, %241, %cst_107 {dimension_numbers = #tpu.dot_dimension_numbers<[1], [0], [0], [1], [0, 0, 1, 1], [], []>} : vector<8x32xf32>, vector<32x32xf32>, vector<8x32xf32> -> vector<8x32xf32>
    %c0_108 = arith.constant 0 : index
    %c0_109 = arith.constant 0 : index
    %243 = vector.load %arg11[%c0_108, %c0_109] : memref<1x32xf32, #tpu.memory_space<vmem>>, vector<1x32xf32>
    %244 = vector.broadcast %243 : vector<1x32xf32> to vector<8x32xf32>
    %245 = arith.addf %242, %244 : vector<8x32xf32>
    %c0_110 = arith.constant 0 : index
    %c0_111 = arith.constant 0 : index
    %c0_112 = arith.constant 0 : index
    %246 = vector.load %arg14[%c0_110, %c0_111, %c0_112] : memref<1x8x32xf32, #tpu.memory_space<vmem>>, vector<1x8x32xf32>
    %247 = vector.shape_cast %246 : vector<1x8x32xf32> to vector<8x32xf32>
    %248 = vector.shape_cast %245 : vector<8x32xf32> to vector<1x8x32xf32>
    tpu.vector_store %arg14[%c0_110, %c0_111, %c0_112], %248 {strides = array<i32>} : memref<1x8x32xf32, #tpu.memory_space<vmem>>, vector<1x8x32xf32>,
    return
  }
  func.func @transform_0(%arg0: i32) -> (i32, i32, i32) {
    %c0_i32 = arith.constant 0 : i32
    %c0_i32_0 = arith.constant 0 : i32
    %c0_i32_1 = arith.constant 0 : i32
    return %arg0, %c0_i32, %c0_i32_0 : i32, i32, i32
  }
  func.func @transform_1(%arg0: i32) -> (i32, i32, i32) {
    %c0_i32 = arith.constant 0 : i32
    %c0_i32_0 = arith.constant 0 : i32
    %c0_i32_1 = arith.constant 0 : i32
    return %arg0, %c0_i32, %c0_i32_0 : i32, i32, i32
  }
  func.func @transform_2(%arg0: i32) -> (i32, i32, i32) {
    %c0_i32 = arith.constant 0 : i32
    %c0_i32_0 = arith.constant 0 : i32
    %c0_i32_1 = arith.constant 0 : i32
    return %arg0, %c0_i32, %c0_i32_0 : i32, i32, i32
  }
  func.func @transform_3(%arg0: i32) -> (i32, i32) {
    %c0_i32 = arith.constant 0 : i32
    %c0_i32_0 = arith.constant 0 : i32
    %c0_i32_1 = arith.constant 0 : i32
    return %c0_i32, %c0_i32_0 : i32, i32
  }
  func.func @transform_4(%arg0: i32) -> (i32, i32) {
    %c0_i32 = arith.constant 0 : i32
    %c0_i32_0 = arith.constant 0 : i32
    %c0_i32_1 = arith.constant 0 : i32
    return %c0_i32, %c0_i32_0 : i32, i32
  }
  func.func @transform_5(%arg0: i32) -> (i32, i32) {
    %c0_i32 = arith.constant 0 : i32
    %c0_i32_0 = arith.constant 0 : i32
    %c0_i32_1 = arith.constant 0 : i32
    return %c0_i32, %c0_i32_0 : i32, i32
  }
  func.func @transform_6(%arg0: i32) -> (i32, i32) {
    %c0_i32 = arith.constant 0 : i32
    %c0_i32_0 = arith.constant 0 : i32
    %c0_i32_1 = arith.constant 0 : i32
    return %c0_i32, %c0_i32_0 : i32, i32
  }
  func.func @transform_7(%arg0: i32) -> (i32, i32) {
    %c0_i32 = arith.constant 0 : i32
    %c0_i32_0 = arith.constant 0 : i32
    %c0_i32_1 = arith.constant 0 : i32
    return %c0_i32, %c0_i32_0 : i32, i32
  }
  func.func @transform_8(%arg0: i32) -> (i32, i32) {
    %c0_i32 = arith.constant 0 : i32
    %c0_i32_0 = arith.constant 0 : i32
    %c0_i32_1 = arith.constant 0 : i32
    return %c0_i32, %c0_i32_0 : i32, i32
  }
  func.func @transform_9(%arg0: i32) -> (i32, i32) {
    %c0_i32 = arith.constant 0 : i32
    %c0_i32_0 = arith.constant 0 : i32
    %c0_i32_1 = arith.constant 0 : i32
    return %c0_i32, %c0_i32_0 : i32, i32
  }
  func.func @transform_10(%arg0: i32) -> (i32, i32) {
    %c0_i32 = arith.constant 0 : i32
    %c0_i32_0 = arith.constant 0 : i32
    %c0_i32_1 = arith.constant 0 : i32
    return %c0_i32, %c0_i32_0 : i32, i32
  }
  func.func @transform_11(%arg0: i32) -> (i32, i32) {
    %c0_i32 = arith.constant 0 : i32
    %c0_i32_0 = arith.constant 0 : i32
    %c0_i32_1 = arith.constant 0 : i32
    return %c0_i32, %c0_i32_0 : i32, i32
  }
  func.func @transform_12(%arg0: i32) -> i32 {
    %c0_i32 = arith.constant 0 : i32
    %c0_i32_0 = arith.constant 0 : i32
    return %c0_i32 : i32
  }
  func.func @transform_13(%arg0: i32) -> (i32, i32, i32) {
    %c0_i32 = arith.constant 0 : i32
    %c0_i32_0 = arith.constant 0 : i32
    %c0_i32_1 = arith.constant 0 : i32
    return %arg0, %c0_i32, %c0_i32_0 : i32, i32, i32
  }
  func.func @transform_14(%arg0: i32) -> (i32, i32, i32, i32) {
    %c0_i32 = arith.constant 0 : i32
    %c0_i32_0 = arith.constant 0 : i32
    %c0_i32_1 = arith.constant 0 : i32
    %c0_i32_2 = arith.constant 0 : i32
    return %arg0, %c0_i32, %c0_i32_0, %c0_i32_1 : i32, i32, i32, i32
  }
}

</mosaic_0001>

<llo_original>
// kernel: tpu_custom_call.1
$region0: #{tpu_custom_call.1}
  #allocation0 [shape = 'u32[]', space=smem, size = 0x4, offset = 0x4, fixed_abs, tag = 'smem constant byte address 0x4 - core index']
  #allocation1 [shape = 'u32[144,128]{1,0:T(1,128)}', space=vmem, size = 0x12000, scoped, tag = 'internal scratch']
  #allocation2 [shape = 'f32[8,32]{1,0:T(8,128)}', space=vmem, size = 0x1000, scoped, tag = 'scratch operand']
  %s0 = inlined_call_operand.hbm [shape: f32[2,8,32], index: 0, kind: input, shape index: {}]
  %s1 = inlined_call_operand.hbm [shape: f32[2,8,32], index: 1, kind: input, shape index: {}]
  %s2 = inlined_call_operand.hbm [shape: f32[2,8,32], index: 2, kind: input, shape index: {}]
  %s3 = inlined_call_operand.hbm [shape: f32[32,32], index: 3, kind: input, shape index: {}]
  %s4 = inlined_call_operand.hbm [shape: f32[32,32], index: 4, kind: input, shape index: {}]
  %s5 = inlined_call_operand.hbm [shape: f32[32,32], index: 5, kind: input, shape index: {}]
  %s6 = inlined_call_operand.vmem [shape: f32[1,32], index: 6, kind: input, shape index: {}]
  %s7 = inlined_call_operand.hbm [shape: f32[1,32], index: 7, kind: input, shape index: {}]
  %s8 = inlined_call_operand.hbm [shape: f32[1,32], index: 8, kind: input, shape index: {}]
  %s9 = inlined_call_operand.vmem [shape: f32[32,32], index: 9, kind: input, shape index: {}]
  %s10 = inlined_call_operand.hbm [shape: f32[1,32], index: 10, kind: input, shape index: {}]
  %s11 = inlined_call_operand.vmem [shape: f32[8,8], index: 11, kind: input, shape index: {}]
  %s12 = inlined_call_operand.vmem [shape: f32[4], index: 12, kind: input, shape index: {}]
  %s13 = inlined_call_operand.hbm [shape: f32[2,8,32], index: 13, kind: output, shape index: {0}]
  %s14 = inlined_call_operand.hbm [shape: f32[2,4,8,8], index: 14, kind: output, shape index: {1}]
  %15 = xla_tuple %s13, %s14
  %s16 = sld [smem:[#allocation0]]
  $region133: #{tpu_custom_call.1} parent=0
    _
  %s18 = ssub.s32 1, %s16
  %s19 = scalar_select 0, %s18, %s16
  $region1: #{tpu_custom_call.1} parent=0
    #allocation3 [shape = 'u8[8192]{0}', space=vmem, size = 0x2000, scoped, tag = 'input window, operand 0']
    #allocation4 [shape = 's32[2]{0}', space=sflag, size = 0x8, scoped, tag = 'scoped memory for tpu_custom_call.1']
    #allocation5 [shape = 's32[2]{0}', space=sflag, size = 0x8, scoped, tag = 'scoped memory for tpu_custom_call.1']
    #allocation6 [shape = 's32[2]{0}', space=sflag, size = 0x8, scoped, tag = 'scoped memory for tpu_custom_call.1']
    #allocation7 [shape = 'u8[8192]{0}', space=vmem, size = 0x2000, scoped, tag = 'input window, operand 1']
    #allocation8 [shape = 's32[2]{0}', space=sflag, size = 0x8, scoped, tag = 'scoped memory for tpu_custom_call.1']
    #allocation9 [shape = 'u8[8192]{0}', space=vmem, size = 0x2000, scoped, tag = 'input window, operand 2']
    #allocation10 [shape = 'u8[16384]{0}', space=vmem, size = 0x4000, scoped, tag = 'input window, operand 3, single buffered']
    #allocation11 [shape = 's32[1]{0}', space=sflag, size = 0x4, scoped, tag = 'scoped memory for tpu_custom_call.1']
    #allocation12 [shape = 'u8[16384]{0}', space=vmem, size = 0x4000, scoped, tag = 'input window, operand 4, single buffered']
    #allocation13 [shape = 'u8[16384]{0}', space=vmem, size = 0x4000, scoped, tag = 'input window, operand 5, single buffered']
    #allocation14 [shape = 's32[1]{0}', space=sflag, size = 0x4, scoped, tag = 'scoped memory for tpu_custom_call.1']
    #allocation15 [shape = 'u8[512]{0}', space=vmem, size = 0x400, scoped, tag = 'input window, operand 7, single buffered']
    #allocation16 [shape = 'u8[512]{0}', space=vmem, size = 0x400, scoped, tag = 'input window, operand 8, single buffered']
    #allocation17 [shape = 's32[1]{0}', space=sflag, size = 0x4, scoped, tag = 'scoped memory for tpu_custom_call.1']
    #allocation18 [shape = 'u8[512]{0}', space=vmem, size = 0x400, scoped, tag = 'input window, operand 10, single buffered']
    #allocation19 [shape = 'u8[512]{0}', space=smem, size = 0x200, scoped, tag = 'input window, operand 12, single buffered']
    #allocation20 [shape = 'u8[8192]{0}', space=vmem, size = 0x2000, scoped, tag = 'output window, operand 0']
    #allocation21 [shape = 'u8[32768]{0}', space=vmem, size = 0x8000, scoped, tag = 'output window, operand 1']
    #allocation22 [shape = 's32[2]{0}', space=sflag, size = 0x8, scoped, tag = 'scoped memory for tpu_custom_call.1']
    %20 = vsyncpa [#allocation4], 0
    %s21 = scalar_lea.sflag [#allocation4], 1
    %22 = vsyncpa %s21, 0
    %23 = vsyncpa [#allocation8], 0
    %s24 = scalar_lea.sflag [#allocation8], 1
    %25 = vsyncpa %s24, 0
    %26 = vsyncpa [#allocation11], 0
    %27 = vsyncpa [#allocation14], 0
    %28 = vsyncpa [#allocation17], 0
    %29 = vsyncpa [#allocation6], 0
    %30 = vsyncpa [#allocation5], 0
    %s31 = scalar_lea.sflag [#allocation5], 1
    %32 = vsyncpa %s31, 0
    %33 = vsyncpa [#allocation22], 0
    %s34 = scalar_lea.sflag [#allocation22], 1
    %35 = vsyncpa %s34, 0
    loop: start=0, step=1, limit=4
    $region2: #{tpu_custom_call.1} parent=1 // loop_pre_header
      _
    $region3: #{tpu_custom_call.1} parent=1 // loop_header
      %s37 = sphi 0, %s41
      %p38 = scmp.ge.s32.totalorder %s37, 4
      %s47 = sphi 0, %s49
      %s50 = sphi 0, %s47
      %s51 = sphi 0, %s50
      %s67 = sphi 0, %s51
      %s73 = sphi 0, %s75
      %s76 = sphi 0, %s73
      %s77 = sphi 0, %s76
      %s93 = sphi 0, %s77
      %s99 = sphi 0, %s101
      %s102 = sphi 0, %s99
      %s103 = sphi 0, %s102
      %s119 = sphi 0, %s103
      %s123 = sphi 0, %s123
      %s125 = sphi 0, %s123
      %s126 = sphi 0, %s125
      %s140 = sphi 0, %s126
      %s144 = sphi 0, %s144
      %s146 = sphi 0, %s144
      %s147 = sphi 0, %s146
      %s161 = sphi 0, %s147
      %s165 = sphi 0, %s165
      %s167 = sphi 0, %s165
      %s168 = sphi 0, %s167
      %s182 = sphi 0, %s168
      %s186 = sphi 0, %s186
      %s188 = sphi 0, %s186
      %s189 = sphi 0, %s188
      %s203 = sphi 0, %s189
      %s207 = sphi 0, %s207
      %s209 = sphi 0, %s207
      %s210 = sphi 0, %s209
      %s224 = sphi 0, %s210
      %s228 = sphi 0, %s228
      %s230 = sphi 0, %s228
      %s231 = sphi 0, %s230
      %s245 = sphi 0, %s231
      %s249 = sphi 0, %s249
      %s251 = sphi 0, %s249
      %s252 = sphi 0, %s251
      %s266 = sphi 0, %s252
      %s270 = sphi 0, %s270
      %s272 = sphi 0, %s270
      %s273 = sphi 0, %s272
      %s287 = sphi 0, %s273
      %s291 = sphi 0, %s291
      %s293 = sphi 0, %s291
      %s294 = sphi 0, %s293
      %s308 = sphi 0, %s294
      %s312 = sphi 0, %s312
      %s314 = sphi 0, %s312
      %s315 = sphi 0, %s314
      %s329 = sphi 0, %s315
      %s335 = sphi 0, %s337
      %s338 = sphi 0, %s335
      %s339 = sphi 0, %s338
      %s355 = sphi 0, %s339
      %s361 = sphi 0, %s363
      %s364 = sphi 0, %s361
      %s365 = sphi 0, %s364
      %s381 = sphi 0, %s365
    $region4: #{tpu_custom_call.1} parent=1 // loop_header_branch
      %40 = sbr.rel (%p38) target = $region8
    $region5: #{tpu_custom_call.1} parent=1 // loop_body
      %s42 = ssub.s32 %s37, 1
      %s43 = ssub.s32 %s37, 2
      %s44 = sadd.s32 %s37, 1
      %s45 = ssub.s32 %s37, %s44
      %p46 = scmp.eq.s32.totalorder %s45, 0
      %s48 = sadd.s32 %s47, 1
      %s49 = scalar_select %p46, %s47, %s48
      %p52 = pneg %p46
      %p53 = scmp.eq.s32.totalorder %s37, 1
      %p54 = por %p52, %p53
      %p55 = scmp.ne.s32.totalorder %s47, %s50
      %p56 = scmp.eq.s32.totalorder %s37, 0
      %p57 = por %p55, %p56
      %p58 = scmp.ne.s32.totalorder %s47, %s50
      %p59 = scmp.eq.s32.totalorder %s42, 1
      %p60 = por %p58, %p59
      %p61 = scmp.ne.s32.totalorder %s50, %s51
      %p62 = scmp.eq.s32.totalorder %s42, 0
      %p63 = por %p61, %p62
      %p64 = scmp.ne.s32.totalorder %s50, %s51
      %p65 = scmp.eq.s32.totalorder %s43, 1
      %p66 = por %p64, %p65
      %p68 = scmp.ne.s32.totalorder %s51, %s67
      %p69 = scmp.eq.s32.totalorder %s43, 0
      %p70 = por %p68, %p69
      %s71 = ssub.s32 %s37, %s44
      %p72 = scmp.eq.s32.totalorder %s71, 0
      %s74 = sadd.s32 %s73, 1
      %s75 = scalar_select %p72, %s73, %s74
      %p78 = pneg %p72
      %p79 = scmp.eq.s32.totalorder %s37, 1
      %p80 = por %p78, %p79
      %p81 = scmp.ne.s32.totalorder %s73, %s76
      %p82 = scmp.eq.s32.totalorder %s37, 0
      %p83 = por %p81, %p82
      %p84 = scmp.ne.s32.totalorder %s73, %s76
      %p85 = scmp.eq.s32.totalorder %s42, 1
      %p86 = por %p84, %p85
      %p87 = scmp.ne.s32.totalorder %s76, %s77
      %p88 = scmp.eq.s32.totalorder %s42, 0
      %p89 = por %p87, %p88
      %p90 = scmp.ne.s32.totalorder %s76, %s77
      %p91 = scmp.eq.s32.totalorder %s43, 1
      %p92 = por %p90, %p91
      %p94 = scmp.ne.s32.totalorder %s77, %s93
      %p95 = scmp.eq.s32.totalorder %s43, 0
      %p96 = por %p94, %p95
      %s97 = ssub.s32 %s37, %s44
      %p98 = scmp.eq.s32.totalorder %s97, 0
      %s100 = sadd.s32 %s99, 1
      %s101 = scalar_select %p98, %s99, %s100
      %p104 = pneg %p98
      %p105 = scmp.eq.s32.totalorder %s37, 1
      %p106 = por %p104, %p105
      %p107 = scmp.ne.s32.totalorder %s99, %s102
      %p108 = scmp.eq.s32.totalorder %s37, 0
      %p109 = por %p107, %p108
      %p110 = scmp.ne.s32.totalorder %s99, %s102
      %p111 = scmp.eq.s32.totalorder %s42, 1
      %p112 = por %p110, %p111
      %p113 = scmp.ne.s32.totalorder %s102, %s103
      %p114 = scmp.eq.s32.totalorder %s42, 0
      %p115 = por %p113, %p114
      %p116 = scmp.ne.s32.totalorder %s102, %s103
      %p117 = scmp.eq.s32.totalorder %s43, 1
      %p118 = por %p116, %p117
      %p120 = scmp.ne.s32.totalorder %s103, %s119
      %p121 = scmp.eq.s32.totalorder %s43, 0
      %p122 = por %p120, %p121
      %s124 = sadd.s32 %s123, 1
      %p127 = scmp.eq.s32.totalorder %s37, 1
      %p128 = scmp.ne.s32.totalorder %s123, %s125
      %p129 = scmp.eq.s32.totalorder %s37, 0
      %p130 = por %p128, %p129
      %p131 = scmp.ne.s32.totalorder %s123, %s125
      %p132 = scmp.eq.s32.totalorder %s42, 1
      %p133 = por %p131, %p132
      %p134 = scmp.ne.s32.totalorder %s125, %s126
      %p135 = scmp.eq.s32.totalorder %s42, 0
      %p136 = por %p134, %p135
      %p137 = scmp.ne.s32.totalorder %s125, %s126
      %p138 = scmp.eq.s32.totalorder %s43, 1
      %p139 = por %p137, %p138
      %p141 = scmp.ne.s32.totalorder %s126, %s140
      %p142 = scmp.eq.s32.totalorder %s43, 0
      %p143 = por %p141, %p142
      %s145 = sadd.s32 %s144, 1
      %p148 = scmp.eq.s32.totalorder %s37, 1
      %p149 = scmp.ne.s32.totalorder %s144, %s146
      %p150 = scmp.eq.s32.totalorder %s37, 0
      %p151 = por %p149, %p150
      %p152 = scmp.ne.s32.totalorder %s144, %s146
      %p153 = scmp.eq.s32.totalorder %s42, 1
      %p154 = por %p152, %p153
      %p155 = scmp.ne.s32.totalorder %s146, %s147
      %p156 = scmp.eq.s32.totalorder %s42, 0
      %p157 = por %p155, %p156
      %p158 = scmp.ne.s32.totalorder %s146, %s147
      %p159 = scmp.eq.s32.totalorder %s43, 1
      %p160 = por %p158, %p159
      %p162 = scmp.ne.s32.totalorder %s147, %s161
      %p163 = scmp.eq.s32.totalorder %s43, 0
      %p164 = por %p162, %p163
      %s166 = sadd.s32 %s165, 1
      %p169 = scmp.eq.s32.totalorder %s37, 1
      %p170 = scmp.ne.s32.totalorder %s165, %s167
      %p171 = scmp.eq.s32.totalorder %s37, 0
      %p172 = por %p170, %p171
      %p173 = scmp.ne.s32.totalorder %s165, %s167
      %p174 = scmp.eq.s32.totalorder %s42, 1
      %p175 = por %p173, %p174
      %p176 = scmp.ne.s32.totalorder %s167, %s168
      %p177 = scmp.eq.s32.totalorder %s42, 0
      %p178 = por %p176, %p177
      %p179 = scmp.ne.s32.totalorder %s167, %s168
      %p180 = scmp.eq.s32.totalorder %s43, 1
      %p181 = por %p179, %p180
      %p183 = scmp.ne.s32.totalorder %s168, %s182
      %p184 = scmp.eq.s32.totalorder %s43, 0
      %p185 = por %p183, %p184
      %s187 = sadd.s32 %s186, 1
      %p190 = scmp.eq.s32.totalorder %s37, 1
      %p191 = scmp.ne.s32.totalorder %s186, %s188
      %p192 = scmp.eq.s32.totalorder %s37, 0
      %p193 = por %p191, %p192
      %p194 = scmp.ne.s32.totalorder %s186, %s188
      %p195 = scmp.eq.s32.totalorder %s42, 1
      %p196 = por %p194, %p195
      %p197 = scmp.ne.s32.totalorder %s188, %s189
      %p198 = scmp.eq.s32.totalorder %s42, 0
      %p199 = por %p197, %p198
      %p200 = scmp.ne.s32.totalorder %s188, %s189
      %p201 = scmp.eq.s32.totalorder %s43, 1
      %p202 = por %p200, %p201
      %p204 = scmp.ne.s32.totalorder %s189, %s203
      %p205 = scmp.eq.s32.totalorder %s43, 0
      %p206 = por %p204, %p205
      %s208 = sadd.s32 %s207, 1
      %p211 = scmp.eq.s32.totalorder %s37, 1
      %p212 = scmp.ne.s32.totalorder %s207, %s209
      %p213 = scmp.eq.s32.totalorder %s37, 0
      %p214 = por %p212, %p213
      %p215 = scmp.ne.s32.totalorder %s207, %s209
      %p216 = scmp.eq.s32.totalorder %s42, 1
      %p217 = por %p215, %p216
      %p218 = scmp.ne.s32.totalorder %s209, %s210
      %p219 = scmp.eq.s32.totalorder %s42, 0
      %p220 = por %p218, %p219
      %p221 = scmp.ne.s32.totalorder %s209, %s210
      %p222 = scmp.eq.s32.totalorder %s43, 1
      %p223 = por %p221, %p222
      %p225 = scmp.ne.s32.totalorder %s210, %s224
      %p226 = scmp.eq.s32.totalorder %s43, 0
      %p227 = por %p225, %p226
      %s229 = sadd.s32 %s228, 1
      %p232 = scmp.eq.s32.totalorder %s37, 1
      %p233 = scmp.ne.s32.totalorder %s228, %s230
      %p234 = scmp.eq.s32.totalorder %s37, 0
      %p235 = por %p233, %p234
      %p236 = scmp.ne.s32.totalorder %s228, %s230
      %p237 = scmp.eq.s32.totalorder %s42, 1
      %p238 = por %p236, %p237
      %p239 = scmp.ne.s32.totalorder %s230, %s231
      %p240 = scmp.eq.s32.totalorder %s42, 0
      %p241 = por %p239, %p240
      %p242 = scmp.ne.s32.totalorder %s230, %s231
      %p243 = scmp.eq.s32.totalorder %s43, 1
      %p244 = por %p242, %p243
      %p246 = scmp.ne.s32.totalorder %s231, %s245
      %p247 = scmp.eq.s32.totalorder %s43, 0
      %p248 = por %p246, %p247
      %s250 = sadd.s32 %s249, 1
      %p253 = scmp.eq.s32.totalorder %s37, 1
      %p254 = scmp.ne.s32.totalorder %s249, %s251
      %p255 = scmp.eq.s32.totalorder %s37, 0
      %p256 = por %p254, %p255
      %p257 = scmp.ne.s32.totalorder %s249, %s251
      %p258 = scmp.eq.s32.totalorder %s42, 1
      %p259 = por %p257, %p258
      %p260 = scmp.ne.s32.totalorder %s251, %s252
      %p261 = scmp.eq.s32.totalorder %s42, 0
      %p262 = por %p260, %p261
      %p263 = scmp.ne.s32.totalorder %s251, %s252
      %p264 = scmp.eq.s32.totalorder %s43, 1
      %p265 = por %p263, %p264
      %p267 = scmp.ne.s32.totalorder %s252, %s266
      %p268 = scmp.eq.s32.totalorder %s43, 0
      %p269 = por %p267, %p268
      %s271 = sadd.s32 %s270, 1
      %p274 = scmp.eq.s32.totalorder %s37, 1
      %p275 = scmp.ne.s32.totalorder %s270, %s272
      %p276 = scmp.eq.s32.totalorder %s37, 0
      %p277 = por %p275, %p276
      %p278 = scmp.ne.s32.totalorder %s270, %s272
      %p279 = scmp.eq.s32.totalorder %s42, 1
      %p280 = por %p278, %p279
      %p281 = scmp.ne.s32.totalorder %s272, %s273
      %p282 = scmp.eq.s32.totalorder %s42, 0
      %p283 = por %p281, %p282
      %p284 = scmp.ne.s32.totalorder %s272, %s273
      %p285 = scmp.eq.s32.totalorder %s43, 1
      %p286 = por %p284, %p285
      %p288 = scmp.ne.s32.totalorder %s273, %s287
      %p289 = scmp.eq.s32.totalorder %s43, 0
      %p290 = por %p288, %p289
      %s292 = sadd.s32 %s291, 1
      %p295 = scmp.eq.s32.totalorder %s37, 1
      %p296 = scmp.ne.s32.totalorder %s291, %s293
      %p297 = scmp.eq.s32.totalorder %s37, 0
      %p298 = por %p296, %p297
      %p299 = scmp.ne.s32.totalorder %s291, %s293
      %p300 = scmp.eq.s32.totalorder %s42, 1
      %p301 = por %p299, %p300
      %p302 = scmp.ne.s32.totalorder %s293, %s294
      %p303 = scmp.eq.s32.totalorder %s42, 0
      %p304 = por %p302, %p303
      %p305 = scmp.ne.s32.totalorder %s293, %s294
      %p306 = scmp.eq.s32.totalorder %s43, 1
      %p307 = por %p305, %p306
      %p309 = scmp.ne.s32.totalorder %s294, %s308
      %p310 = scmp.eq.s32.totalorder %s43, 0
      %p311 = por %p309, %p310
      %s313 = sadd.s32 %s312, 1
      %p316 = scmp.eq.s32.totalorder %s37, 1
      %p317 = scmp.ne.s32.totalorder %s312, %s314
      %p318 = scmp.eq.s32.totalorder %s37, 0
      %p319 = por %p317, %p318
      %p320 = scmp.ne.s32.totalorder %s312, %s314
      %p321 = scmp.eq.s32.totalorder %s42, 1
      %p322 = por %p320, %p321
      %p323 = scmp.ne.s32.totalorder %s314, %s315
      %p324 = scmp.eq.s32.totalorder %s42, 0
      %p325 = por %p323, %p324
      %p326 = scmp.ne.s32.totalorder %s314, %s315
      %p327 = scmp.eq.s32.totalorder %s43, 1
      %p328 = por %p326, %p327
      %p330 = scmp.ne.s32.totalorder %s315, %s329
      %p331 = scmp.eq.s32.totalorder %s43, 0
      %p332 = por %p330, %p331
      %s333 = ssub.s32 %s37, %s44
      %p334 = scmp.eq.s32.totalorder %s333, 0
      %s336 = sadd.s32 %s335, 1
      %s337 = scalar_select %p334, %s335, %s336
      %p340 = pneg %p334
      %p341 = scmp.eq.s32.totalorder %s37, 1
      %p342 = por %p340, %p341
      %p343 = scmp.ne.s32.totalorder %s335, %s338
      %p344 = scmp.eq.s32.totalorder %s37, 0
      %p345 = por %p343, %p344
      %p346 = scmp.ne.s32.totalorder %s335, %s338
      %p347 = scmp.eq.s32.totalorder %s42, 1
      %p348 = por %p346, %p347
      %p349 = scmp.ne.s32.totalorder %s338, %s339
      %p350 = scmp.eq.s32.totalorder %s42, 0
      %p351 = por %p349, %p350
      %p352 = scmp.ne.s32.totalorder %s338, %s339
      %p353 = scmp.eq.s32.totalorder %s43, 1
      %p354 = por %p352, %p353
      %p356 = scmp.ne.s32.totalorder %s339, %s355
      %p357 = scmp.eq.s32.totalorder %s43, 0
      %p358 = por %p356, %p357
      %s359 = ssub.s32 %s37, %s44
      %p360 = scmp.eq.s32.totalorder %s359, 0
      %s362 = sadd.s32 %s361, 1
      %s363 = scalar_select %p360, %s361, %s362
      %p366 = pneg %p360
      %p367 = scmp.eq.s32.totalorder %s37, 1
      %p368 = por %p366, %p367
      %p369 = scmp.ne.s32.totalorder %s361, %s364
      %p370 = scmp.eq.s32.totalorder %s37, 0
      %p371 = por %p369, %p370
      %p372 = scmp.ne.s32.totalorder %s361, %s364
      %p373 = scmp.eq.s32.totalorder %s42, 1
      %p374 = por %p372, %p373
      %p375 = scmp.ne.s32.totalorder %s364, %s365
      %p376 = scmp.eq.s32.totalorder %s42, 0
      %p377 = por %p375, %p376
      %p378 = scmp.ne.s32.totalorder %s364, %s365
      %p379 = scmp.eq.s32.totalorder %s43, 1
      %p380 = por %p378, %p379
      %p382 = scmp.ne.s32.totalorder %s365, %s381
      %p383 = scmp.eq.s32.totalorder %s43, 0
      %p384 = por %p382, %p383
      %p385 = scmp.le.s32.totalorder 1, %s37
      %p386 = scmp.lt.s32.totalorder %s37, 3
      %p387 = pnand %p385, %p386
      %p388 = pneg %p387
      // Predicated region
      $region9: #{tpu_custom_call.1} parent=5 // pred_check
        _
      $region10: #{tpu_custom_call.1} parent=5 // pred_check_branch
        %390 = sbr.rel (%p387) target = $region12
      $region11: #{tpu_custom_call.1} parent=5 // pred_region
        %s391 = ssub.s32 %s37, 1
        // Predicated region
        $region13: #{tpu_custom_call.1} parent=11 // pred_check
          %p392 = pneg %p136
        $region14: #{tpu_custom_call.1} parent=11 // pred_check_branch
          %394 = sbr.rel (%p392) target = $region16
        $region15: #{tpu_custom_call.1} parent=11 // pred_region
          %s396 = ssub.s32 512, 512
          %397 = vsyncadd [#allocation11], %s396
          %s398 = sshll.u32 [#allocation10], 4
          %s399 = int_to_ptr.vmem [resolvable:$true] %s398
          %404 = dma.hbm_to_vmem [thread:$0]  %s3, 512, %s399, [#allocation11], 128, 128, 8
        $region16: #{tpu_custom_call.1} parent=11 // pred_fallthru
          _
        // Predicated region
        $region17: #{tpu_custom_call.1} parent=11 // pred_check
          %p405 = pneg %p157
        $region18: #{tpu_custom_call.1} parent=11 // pred_check_branch
          %407 = sbr.rel (%p405) target = $region20
        $region19: #{tpu_custom_call.1} parent=11 // pred_region
          %s409 = ssub.s32 512, 512
          %410 = vsyncadd [#allocation11], %s409
          %s411 = sshll.u32 [#allocation12], 4
          %s412 = int_to_ptr.vmem [resolvable:$true] %s411
          %417 = dma.hbm_to_vmem [thread:$0]  %s4, 512, %s412, [#allocation11], 128, 128, 8
        $region20: #{tpu_custom_call.1} parent=11 // pred_fallthru
          _
        // Predicated region
        $region21: #{tpu_custom_call.1} parent=11 // pred_check
          %p418 = pneg %p178
        $region22: #{tpu_custom_call.1} parent=11 // pred_check_branch
          %420 = sbr.rel (%p418) target = $region24
        $region23: #{tpu_custom_call.1} parent=11 // pred_region
          %s422 = ssub.s32 512, 512
          %423 = vsyncadd [#allocation14], %s422
          %s424 = sshll.u32 [#allocation13], 4
          %s425 = int_to_ptr.vmem [resolvable:$true] %s424
          %430 = dma.hbm_to_vmem [thread:$0]  %s5, 512, %s425, [#allocation14], 128, 128, 8
        $region24: #{tpu_custom_call.1} parent=11 // pred_fallthru
          _
        // Predicated region
        $region25: #{tpu_custom_call.1} parent=11 // pred_check
          %p431 = pneg %p199
        $region26: #{tpu_custom_call.1} parent=11 // pred_check_branch
          %433 = sbr.rel (%p431) target = $region28
        $region27: #{tpu_custom_call.1} parent=11 // pred_region
          _
        $region28: #{tpu_custom_call.1} parent=11 // pred_fallthru
          _
        // Predicated region
        $region29: #{tpu_custom_call.1} parent=11 // pred_check
          %p434 = pneg %p220
        $region30: #{tpu_custom_call.1} parent=11 // pred_check_branch
          %436 = sbr.rel (%p434) target = $region32
        $region31: #{tpu_custom_call.1} parent=11 // pred_region
          %s438 = ssub.s32 16, 16
          %439 = vsyncadd [#allocation14], %s438
          %s441 = sshll.u32 [#allocation15], 4
          %s442 = int_to_ptr.vmem [resolvable:$true] %s441
          %444 = dma.hbm_to_vmem [thread:$0]  %s7, 16, %s442, [#allocation14]
        $region32: #{tpu_custom_call.1} parent=11 // pred_fallthru
          _
        // Predicated region
        $region33: #{tpu_custom_call.1} parent=11 // pred_check
          %p445 = pneg %p241
        $region34: #{tpu_custom_call.1} parent=11 // pred_check_branch
          %447 = sbr.rel (%p445) target = $region36
        $region35: #{tpu_custom_call.1} parent=11 // pred_region
          %s449 = ssub.s32 16, 16
          %450 = vsyncadd [#allocation17], %s449
          %s452 = sshll.u32 [#allocation16], 4
          %s453 = int_to_ptr.vmem [resolvable:$true] %s452
          %455 = dma.hbm_to_vmem [thread:$0]  %s8, 16, %s453, [#allocation17]
        $region36: #{tpu_custom_call.1} parent=11 // pred_fallthru
          _
        // Predicated region
        $region37: #{tpu_custom_call.1} parent=11 // pred_check
          %p456 = pneg %p262
        $region38: #{tpu_custom_call.1} parent=11 // pred_check_branch
          %458 = sbr.rel (%p456) target = $region40
        $region39: #{tpu_custom_call.1} parent=11 // pred_region
          _
        $region40: #{tpu_custom_call.1} parent=11 // pred_fallthru
          _
        // Predicated region
        $region41: #{tpu_custom_call.1} parent=11 // pred_check
          %p459 = pneg %p283
        $region42: #{tpu_custom_call.1} parent=11 // pred_check_branch
          %461 = sbr.rel (%p459) target = $region44
        $region43: #{tpu_custom_call.1} parent=11 // pred_region
          %s463 = ssub.s32 16, 16
          %464 = vsyncadd [#allocation17], %s463
          %s466 = sshll.u32 [#allocation18], 4
          %s467 = int_to_ptr.vmem [resolvable:$true] %s466
          %469 = dma.hbm_to_vmem [thread:$0]  %s10, 16, %s467, [#allocation17]
        $region44: #{tpu_custom_call.1} parent=11 // pred_fallthru
          _
        // Predicated region
        $region45: #{tpu_custom_call.1} parent=11 // pred_check
          %p470 = pneg %p304
        $region46: #{tpu_custom_call.1} parent=11 // pred_check_branch
          %472 = sbr.rel (%p470) target = $region48
        $region47: #{tpu_custom_call.1} parent=11 // pred_region
          _
        $region48: #{tpu_custom_call.1} parent=11 // pred_fallthru
          _
        // Predicated region
        $region49: #{tpu_custom_call.1} parent=11 // pred_check
          %p473 = pneg %p325
        $region50: #{tpu_custom_call.1} parent=11 // pred_check_branch
          %475 = sbr.rel (%p473) target = $region52
        $region51: #{tpu_custom_call.1} parent=11 // pred_region
          %s477 = ssub.s32 16, 16
          %478 = vsyncadd [#allocation6], %s477
          %s480 = sshll.u32 %s12, 4
          %s481 = int_to_ptr.vmem [resolvable:$true] %s480
          %483 = dma.vmem_to_smem %s481, 16, [#allocation19], [#allocation6]
        $region52: #{tpu_custom_call.1} parent=11 // pred_fallthru
          _
      $region12: #{tpu_custom_call.1} parent=5 // pred_fallthru
        _
      %p484 = scmp.lt.s32.totalorder %s37, 2
      // Predicated region
      $region53: #{tpu_custom_call.1} parent=5 // pred_check
        %p485 = pneg %p484
      $region54: #{tpu_custom_call.1} parent=5 // pred_check_branch
        %487 = sbr.rel (%p485) target = $region56
      $region55: #{tpu_custom_call.1} parent=5 // pred_region
        // Predicated region
        $region57: #{tpu_custom_call.1} parent=55 // pred_check
          %p488 = pneg %p57
        $region58: #{tpu_custom_call.1} parent=55 // pred_check_branch
          %490 = sbr.rel (%p488) target = $region60
        $region59: #{tpu_custom_call.1} parent=55 // pred_region
          %s491 = sand.u32 %s47, 1
          %s492 = scalar_lea.sflag [#allocation4], %s491
          %s493 = sand.u32 %s47, 1
          %s494 = smul.addr %s493, 8
          %s495 = scalar_lea.vmem [#allocation3], %s494
          %s497 = ssub.s32 128, 128
          %498 = vsyncadd %s492, %s497
          %s499 = smul.addr %s37, 128
          %s500 = scalar_lea.hbm %s0, %s499
          %s502 = sshll.u32 %s495, 4
          %s503 = int_to_ptr.vmem [resolvable:$true] %s502
          %505 = dma.hbm_to_vmem [thread:$0]  %s500, 128, %s503, %s492
        $region60: #{tpu_custom_call.1} parent=55 // pred_fallthru
          _
        // Predicated region
        $region61: #{tpu_custom_call.1} parent=55 // pred_check
          %p506 = pneg %p83
        $region62: #{tpu_custom_call.1} parent=55 // pred_check_branch
          %508 = sbr.rel (%p506) target = $region64
        $region63: #{tpu_custom_call.1} parent=55 // pred_region
          %s509 = sand.u32 %s37, 1
          %s510 = scalar_lea.sflag [#allocation8], %s509
          %s511 = sand.u32 %s73, 1
          %s512 = smul.addr %s511, 8
          %s513 = scalar_lea.vmem [#allocation7], %s512
          %s515 = ssub.s32 128, 128
          %516 = vsyncadd %s510, %s515
          %s517 = smul.addr %s37, 128
          %s518 = scalar_lea.hbm %s1, %s517
          %s520 = sshll.u32 %s513, 4
          %s521 = int_to_ptr.vmem [resolvable:$true] %s520
          %523 = dma.hbm_to_vmem [thread:$0]  %s518, 128, %s521, %s510
        $region64: #{tpu_custom_call.1} parent=55 // pred_fallthru
          _
        // Predicated region
        $region65: #{tpu_custom_call.1} parent=55 // pred_check
          %p524 = pneg %p109
        $region66: #{tpu_custom_call.1} parent=55 // pred_check_branch
          %526 = sbr.rel (%p524) target = $region68
        $region67: #{tpu_custom_call.1} parent=55 // pred_region
          %s527 = sand.u32 %s37, 1
          %s528 = scalar_lea.sflag [#allocation8], %s527
          %s529 = sand.u32 %s99, 1
          %s530 = smul.addr %s529, 8
          %s531 = scalar_lea.vmem [#allocation9], %s530
          %s533 = ssub.s32 128, 128
          %534 = vsyncadd %s528, %s533
          %s535 = smul.addr %s37, 128
          %s536 = scalar_lea.hbm %s2, %s535
          %s538 = sshll.u32 %s531, 4
          %s539 = int_to_ptr.vmem [resolvable:$true] %s538
          %541 = dma.hbm_to_vmem [thread:$0]  %s536, 128, %s539, %s528
        $region68: #{tpu_custom_call.1} parent=55 // pred_fallthru
          _
      $region56: #{tpu_custom_call.1} parent=5 // pred_fallthru
        _
      %p542 = scmp.le.s32.totalorder 1, %s37
      %p543 = scmp.lt.s32.totalorder %s37, 3
      %p544 = pnand %p542, %p543
      %p545 = pneg %p544
      // Predicated region
      $region69: #{tpu_custom_call.1} parent=5 // pred_check
        _
      $region70: #{tpu_custom_call.1} parent=5 // pred_check_branch
        %547 = sbr.rel (%p544) target = $region72
      $region71: #{tpu_custom_call.1} parent=5 // pred_region
        %s548 = ssub.s32 %s37, 1
        %s549 = sand.u32 %s50, 1
        %s550 = scalar_lea.sflag [#allocation4], %s549
        %s551 = sand.u32 %s50, 1
        %s552 = smul.addr %s551, 8
        %s553 = scalar_lea.vmem [#allocation3], %s552
        // Predicated region
        $region73: #{tpu_custom_call.1} parent=71 // pred_check
          %p554 = pneg %p63
        $region74: #{tpu_custom_call.1} parent=71 // pred_check_branch
          %556 = sbr.rel (%p554) target = $region76
        $region75: #{tpu_custom_call.1} parent=71 // pred_region
          %557 = dma.done %s550, 128
        $region76: #{tpu_custom_call.1} parent=71 // pred_fallthru
          _
        %s558 = sand.u32 %s42, 1
        %s559 = scalar_lea.sflag [#allocation8], %s558
        %s560 = sand.u32 %s76, 1
        %s561 = smul.addr %s560, 8
        %s562 = scalar_lea.vmem [#allocation7], %s561
        // Predicated region
        $region77: #{tpu_custom_call.1} parent=71 // pred_check
          %p563 = pneg %p89
        $region78: #{tpu_custom_call.1} parent=71 // pred_check_branch
          %565 = sbr.rel (%p563) target = $region80
        $region79: #{tpu_custom_call.1} parent=71 // pred_region
          %566 = dma.done %s559, 128
        $region80: #{tpu_custom_call.1} parent=71 // pred_fallthru
          _
        %s567 = sand.u32 %s42, 1
        %s568 = scalar_lea.sflag [#allocation8], %s567
        %s569 = sand.u32 %s102, 1
        %s570 = smul.addr %s569, 8
        %s571 = scalar_lea.vmem [#allocation9], %s570
        // Predicated region
        $region81: #{tpu_custom_call.1} parent=71 // pred_check
          %p572 = pneg %p115
        $region82: #{tpu_custom_call.1} parent=71 // pred_check_branch
          %574 = sbr.rel (%p572) target = $region84
        $region83: #{tpu_custom_call.1} parent=71 // pred_region
          %575 = dma.done %s568, 128
        $region84: #{tpu_custom_call.1} parent=71 // pred_fallthru
          _
        // Predicated region
        $region85: #{tpu_custom_call.1} parent=71 // pred_check
          %p576 = pneg %p136
        $region86: #{tpu_custom_call.1} parent=71 // pred_check_branch
          %578 = sbr.rel (%p576) target = $region88
        $region87: #{tpu_custom_call.1} parent=71 // pred_region
          %579 = dma.done [#allocation11], 512
        $region88: #{tpu_custom_call.1} parent=71 // pred_fallthru
          _
        // Predicated region
        $region89: #{tpu_custom_call.1} parent=71 // pred_check
          %p580 = pneg %p157
        $region90: #{tpu_custom_call.1} parent=71 // pred_check_branch
          %582 = sbr.rel (%p580) target = $region92
        $region91: #{tpu_custom_call.1} parent=71 // pred_region
          %583 = dma.done [#allocation11], 512
        $region92: #{tpu_custom_call.1} parent=71 // pred_fallthru
          _
        // Predicated region
        $region93: #{tpu_custom_call.1} parent=71 // pred_check
          %p584 = pneg %p178
        $region94: #{tpu_custom_call.1} parent=71 // pred_check_branch
          %586 = sbr.rel (%p584) target = $region96
        $region95: #{tpu_custom_call.1} parent=71 // pred_region
          %587 = dma.done [#allocation14], 512
        $region96: #{tpu_custom_call.1} parent=71 // pred_fallthru
          _
        // Predicated region
        $region97: #{tpu_custom_call.1} parent=71 // pred_check
          %p588 = pneg %p220
        $region98: #{tpu_custom_call.1} parent=71 // pred_check_branch
          %590 = sbr.rel (%p588) target = $region100
        $region99: #{tpu_custom_call.1} parent=71 // pred_region
          %591 = dma.done [#allocation14], 16
        $region100: #{tpu_custom_call.1} parent=71 // pred_fallthru
          _
        // Predicated region
        $region101: #{tpu_custom_call.1} parent=71 // pred_check
          %p592 = pneg %p241
        $region102: #{tpu_custom_call.1} parent=71 // pred_check_branch
          %594 = sbr.rel (%p592) target = $region104
        $region103: #{tpu_custom_call.1} parent=71 // pred_region
          %595 = dma.done [#allocation17], 16
        $region104: #{tpu_custom_call.1} parent=71 // pred_fallthru
          _
        // Predicated region
        $region105: #{tpu_custom_call.1} parent=71 // pred_check
          %p596 = pneg %p283
        $region106: #{tpu_custom_call.1} parent=71 // pred_check_branch
          %598 = sbr.rel (%p596) target = $region108
        $region107: #{tpu_custom_call.1} parent=71 // pred_region
          %599 = dma.done [#allocation17], 16
        $region108: #{tpu_custom_call.1} parent=71 // pred_fallthru
          _
        // Predicated region
        $region109: #{tpu_custom_call.1} parent=71 // pred_check
          %p600 = pneg %p325
        $region110: #{tpu_custom_call.1} parent=71 // pred_check_branch
          %602 = sbr.rel (%p600) target = $region112
        $region111: #{tpu_custom_call.1} parent=71 // pred_region
          %603 = dma.done [#allocation6], 16
        $region112: #{tpu_custom_call.1} parent=71 // pred_fallthru
          _
        %604 = sfence
        %s605 = sand.u32 %s50, 1
        %s606 = scalar_lea.sflag [#allocation4], %s605
        %s607 = sand.u32 %s50, 1
        %s608 = smul.addr %s607, 8
        %s609 = scalar_lea.vmem [#allocation3], %s608
        %p610 = pneg %p63
        %p611 = pneg %p60
        %s612 = sand.u32 %s42, 1
        %s613 = scalar_lea.sflag [#allocation8], %s612
        %s614 = sand.u32 %s76, 1
        %s615 = smul.addr %s614, 8
        %s616 = scalar_lea.vmem [#allocation7], %s615
        %p617 = pneg %p89
        %p618 = pneg %p86
        %s619 = sand.u32 %s42, 1
        %s620 = scalar_lea.sflag [#allocation8], %s619
        %s621 = sand.u32 %s102, 1
        %s622 = smul.addr %s621, 8
        %s623 = scalar_lea.vmem [#allocation9], %s622
        %p624 = pneg %p115
        %p625 = pneg %p112
        %p626 = pneg %p136
        %p627 = pneg %p133
        %p628 = pneg %p157
        %p629 = pneg %p154
        %p630 = pneg %p178
        %p631 = pneg %p175
        %p632 = pneg %p199
        %p633 = pneg %p196
        %p634 = pneg %p220
        %p635 = pneg %p217
        %p636 = pneg %p241
        %p637 = pneg %p238
        %p638 = pneg %p262
        %p639 = pneg %p259
        %p640 = pneg %p283
        %p641 = pneg %p280
        %p642 = pneg %p304
        %p643 = pneg %p301
        %p644 = pneg %p325
        %p645 = pneg %p322
        %p646 = pneg %p351
        %p647 = pneg %p348
        %s648 = sand.u32 %s338, 1
        %s649 = scalar_lea.sflag [#allocation5], %s648
        %s650 = sand.u32 %s338, 1
        %s651 = smul.addr %s650, 8
        %s652 = scalar_lea.vmem [#allocation20], %s651
        %p653 = pneg %p377
        %p654 = pneg %p374
        %s655 = sand.u32 %s364, 1
        %s656 = scalar_lea.sflag [#allocation22], %s655
        %s657 = sand.u32 %s364, 1
        %s658 = smul.addr %s657, 32
        %s659 = scalar_lea.vmem [#allocation21], %s658
        %v660 = vld [vmem:[%s553] sm:$0xff]
        %v661 = vld [vmem:[%s562] sm:$0xff]
        %v662 = vld [vmem:[%s571] sm:$0xff]
        %v663 = vld [vmem:[%s11] sm:$0xff]
        %vm664 = vcmp.ne.f32.partialorder %v663, 0.0
        %v665 = vlaneseq
        %v666 = vshrl.u32 %v665, 7
        %v667 = vlaneseq
        %v668 = vand.u32 %v667, 127
        %vm669 = vcmp.le.s32.totalorder %v666, %v668
        %v670 = vsel %vm669, 1, 0
        %v671 = vcvt.s32.f32 %v670
        %v672 = vsub.s32 %v668, %v666
        %vm673 = vcmp.lt.s32.totalorder %v672, 0
        %v674 = vsub.s32 0, %v672
        %v675 = vsel %vm673, %v674, %v672
        %v676 = vcvt.s32.f32 %v675
        %v677 = vld [vmem:[#allocation10] sm:$0xff]
        %v678 = vld [vmem:[#allocation10 + $0x8] sm:$0xff]
        %v679 = vld [vmem:[#allocation10 + $0x10] sm:$0xff]
        %v680 = vld [vmem:[#allocation10 + $0x18] sm:$0xff]
        %v681 = vld [vmem:[%s6] sm:$0x1]
        %v683 = vlaneseq
        %v684 = vshrl.u32 %v683, 7
        %v685 = vsub.s32 0, %v684
        %v686 = vrot.slane %v681, %v685
        %vm688 = vcmask 261120
        %v690 = vsel %vm688, %v660, 0
        %692 = vmatprep.subr.mxu0 0.0
        %693 = vmatpush1.msra.mxu0 %v677
        %694 = vmatprep.subr.mxu0 0.0
        %695 = vmatpush1.msra.mxu0 %v678
        %696 = vmatprep.subr.mxu0 0.0
        %697 = vmatpush1.msra.mxu0 %v679
        %698 = vmatprep.subr.mxu0 0.0
        %699 = vmatpush1.msra.mxu0 %v680
        %700 = vmatprep.subr.mxu0 0.0
        %701 = vmatpush1.msra.mxu0 0.0
        %702 = vmatprep.subr.mxu0 0.0
        %703 = vmatpush1.msra.mxu0 0.0
        %704 = vmatprep.subr.mxu0 0.0
        %705 = vmatpush1.msra.mxu0 0.0
        %706 = vmatprep.subr.mxu0 0.0
        %707 = vmatpush1.msra.mxu0 0.0
        %708 = vmatprep.subr.mxu0 0.0
        %709 = vmatpush1.msra.mxu0 0.0
        %710 = vmatprep.subr.mxu0 0.0
        %711 = vmatpush1.msra.mxu0 0.0
        %712 = vmatprep.subr.mxu0 0.0
        %713 = vmatpush1.msra.mxu0 0.0
        %714 = vmatprep.subr.mxu0 0.0
        %715 = vmatpush1.msra.mxu0 0.0
        %716 = vmatprep.subr.mxu0 0.0
        %717 = vmatpush1.msra.mxu0 0.0
        %718 = vmatprep.subr.mxu0 0.0
        %719 = vmatpush1.msra.mxu0 0.0
        %720 = vmatprep.subr.mxu0 0.0
        %721 = vmatpush1.msra.mxu0 0.0
        %722 = vmatprep.subr.mxu0 0.0
        %723 = vmatpush1.msra.mxu0 0.0
        %724 = vmatprep.subr.mxu0 0.0
        %725 = vmatpush1.msra.mxu0 0.0
        %726 = vmatprep.subr.mxu0 0.0
        %727 = vmatpush1.msra.mxu0 0.0
        %728 = vmatprep.subr.mxu0 0.0
        %729 = vmatpush1.msra.mxu0 0.0
        %730 = vmatprep.subr.mxu0 0.0
        %731 = vmatpush1.msra.mxu0 0.0
        %732 = vmatprep.subr.mxu0 0.0
        %733 = vmatpush1.msra.mxu0 0.0
        %734 = vmatprep.subr.mxu0 0.0
        %735 = vmatpush1.msra.mxu0 0.0
        %736 = vmatprep.subr.mxu0 0.0
        %737 = vmatpush1.msra.mxu0 0.0
        %738 = vmatprep.subr.mxu0 0.0
        %739 = vmatpush1.msra.mxu0 0.0
        %740 = vmatprep.subr.mxu0 0.0
        %741 = vmatpush1.msra.mxu0 0.0
        %742 = vmatprep.subr.mxu0 0.0
        %743 = vmatpush1.msra.mxu0 0.0
        %744 = vmatprep.subr.mxu0 0.0
        %745 = vmatpush1.msra.mxu0 0.0
        %746 = vmatprep.subr.mxu0 0.0
        %747 = vmatpush1.msra.mxu0 0.0
        %748 = vmatprep.subr.mxu0 0.0
        %749 = vmatpush1.msra.mxu0 0.0
        %750 = vmatprep.subr.mxu0 0.0
        %751 = vmatpush1.msra.mxu0 0.0
        %752 = vmatprep.subr.mxu0 0.0
        %753 = vmatpush1.msra.mxu0 0.0
        %754 = vmatprep.subr.mxu0 0.0
        %755 = vmatpush1.msra.mxu0 0.0
        %756 = vmatprep.mubr.f32.mxu0 0.0
        %757 = vmatmul.mubr.f32.gmra.mrb[0].mxu0 %v690
        %v758 = vpop.f32.mrb[0].mxu0
        %v759 = vadd.f32 %v686, %v758
        %v760 = vpop.f32.mrb[0].mxu0
        %761 = vdwg.mxu0
        %v762 = vld [vmem:[#allocation12] sm:$0xff]
        %v763 = vld [vmem:[#allocation12 + $0x8] sm:$0xff]
        %v764 = vld [vmem:[#allocation12 + $0x10] sm:$0xff]
        %v765 = vld [vmem:[#allocation12 + $0x18] sm:$0xff]
        %v766 = vld [vmem:[#allocation15] sm:$0x1]
        %v768 = vlaneseq
        %v769 = vshrl.u32 %v768, 7
        %v770 = vsub.s32 0, %v769
        %v771 = vrot.slane %v766, %v770
        %v774 = vsel %vm688, %v661, 0
        %776 = vmatprep.subr.mxu0 0.0
        %777 = vmatpush1.msra.mxu0 %v762
        %778 = vmatprep.subr.mxu0 0.0
        %779 = vmatpush1.msra.mxu0 %v763
        %780 = vmatprep.subr.mxu0 0.0
        %781 = vmatpush1.msra.mxu0 %v764
        %782 = vmatprep.subr.mxu0 0.0
        %783 = vmatpush1.msra.mxu0 %v765
        %784 = vmatprep.subr.mxu0 0.0
        %785 = vmatpush1.msra.mxu0 0.0
        %786 = vmatprep.subr.mxu0 0.0
        %787 = vmatpush1.msra.mxu0 0.0
        %788 = vmatprep.subr.mxu0 0.0
        %789 = vmatpush1.msra.mxu0 0.0
        %790 = vmatprep.subr.mxu0 0.0
        %791 = vmatpush1.msra.mxu0 0.0
        %792 = vmatprep.subr.mxu0 0.0
        %793 = vmatpush1.msra.mxu0 0.0
        %794 = vmatprep.subr.mxu0 0.0
        %795 = vmatpush1.msra.mxu0 0.0
        %796 = vmatprep.subr.mxu0 0.0
        %797 = vmatpush1.msra.mxu0 0.0
        %798 = vmatprep.subr.mxu0 0.0
        %799 = vmatpush1.msra.mxu0 0.0
        %800 = vmatprep.subr.mxu0 0.0
        %801 = vmatpush1.msra.mxu0 0.0
        %802 = vmatprep.subr.mxu0 0.0
        %803 = vmatpush1.msra.mxu0 0.0
        %804 = vmatprep.subr.mxu0 0.0
        %805 = vmatpush1.msra.mxu0 0.0
        %806 = vmatprep.subr.mxu0 0.0
        %807 = vmatpush1.msra.mxu0 0.0
        %808 = vmatprep.subr.mxu0 0.0
        %809 = vmatpush1.msra.mxu0 0.0
        %810 = vmatprep.subr.mxu0 0.0
        %811 = vmatpush1.msra.mxu0 0.0
        %812 = vmatprep.subr.mxu0 0.0
        %813 = vmatpush1.msra.mxu0 0.0
        %814 = vmatprep.subr.mxu0 0.0
        %815 = vmatpush1.msra.mxu0 0.0
        %816 = vmatprep.subr.mxu0 0.0
        %817 = vmatpush1.msra.mxu0 0.0
        %818 = vmatprep.subr.mxu0 0.0
        %819 = vmatpush1.msra.mxu0 0.0
        %820 = vmatprep.subr.mxu0 0.0
        %821 = vmatpush1.msra.mxu0 0.0
        %822 = vmatprep.subr.mxu0 0.0
        %823 = vmatpush1.msra.mxu0 0.0
        %824 = vmatprep.subr.mxu0 0.0
        %825 = vmatpush1.msra.mxu0 0.0
        %826 = vmatprep.subr.mxu0 0.0
        %827 = vmatpush1.msra.mxu0 0.0
        %828 = vmatprep.subr.mxu0 0.0
        %829 = vmatpush1.msra.mxu0 0.0
        %830 = vmatprep.subr.mxu0 0.0
        %831 = vmatpush1.msra.mxu0 0.0
        %832 = vmatprep.subr.mxu0 0.0
        %833 = vmatpush1.msra.mxu0 0.0
        %834 = vmatprep.subr.mxu0 0.0
        %835 = vmatpush1.msra.mxu0 0.0
        %836 = vmatprep.subr.mxu0 0.0
        %837 = vmatpush1.msra.mxu0 0.0
        %838 = vmatprep.subr.mxu0 0.0
        %839 = vmatpush1.msra.mxu0 0.0
        %840 = vmatprep.mubr.f32.mxu0 0.0
        %841 = vmatmul.mubr.f32.gmra.mrb[0].mxu0 %v774
        %v842 = vpop.f32.mrb[0].mxu0
        %v843 = vadd.f32 %v771, %v842
        %v844 = vpop.f32.mrb[0].mxu0
        %845 = vdwg.mxu0
        %v846 = vld [vmem:[#allocation13] sm:$0xff]
        %v847 = vld [vmem:[#allocation13 + $0x8] sm:$0xff]
        %v848 = vld [vmem:[#allocation13 + $0x10] sm:$0xff]
        %v849 = vld [vmem:[#allocation13 + $0x18] sm:$0xff]
        %v850 = vld [vmem:[#allocation16] sm:$0x1]
        %v852 = vlaneseq
        %v853 = vshrl.u32 %v852, 7
        %v854 = vsub.s32 0, %v853
        %v855 = vrot.slane %v850, %v854
        %v858 = vsel %vm688, %v662, 0
        %860 = vmatprep.subr.mxu0 0.0
        %861 = vmatpush1.msra.mxu0 %v846
        %862 = vmatprep.subr.mxu0 0.0
        %863 = vmatpush1.msra.mxu0 %v847
        %864 = vmatprep.subr.mxu0 0.0
        %865 = vmatpush1.msra.mxu0 %v848
        %866 = vmatprep.subr.mxu0 0.0
        %867 = vmatpush1.msra.mxu0 %v849
        %868 = vmatprep.subr.mxu0 0.0
        %869 = vmatpush1.msra.mxu0 0.0
        %870 = vmatprep.subr.mxu0 0.0
        %871 = vmatpush1.msra.mxu0 0.0
        %872 = vmatprep.subr.mxu0 0.0
        %873 = vmatpush1.msra.mxu0 0.0
        %874 = vmatprep.subr.mxu0 0.0
        %875 = vmatpush1.msra.mxu0 0.0
        %876 = vmatprep.subr.mxu0 0.0
        %877 = vmatpush1.msra.mxu0 0.0
        %878 = vmatprep.subr.mxu0 0.0
        %879 = vmatpush1.msra.mxu0 0.0
        %880 = vmatprep.subr.mxu0 0.0
        %881 = vmatpush1.msra.mxu0 0.0
        %882 = vmatprep.subr.mxu0 0.0
        %883 = vmatpush1.msra.mxu0 0.0
        %884 = vmatprep.subr.mxu0 0.0
        %885 = vmatpush1.msra.mxu0 0.0
        %886 = vmatprep.subr.mxu0 0.0
        %887 = vmatpush1.msra.mxu0 0.0
        %888 = vmatprep.subr.mxu0 0.0
        %889 = vmatpush1.msra.mxu0 0.0
        %890 = vmatprep.subr.mxu0 0.0
        %891 = vmatpush1.msra.mxu0 0.0
        %892 = vmatprep.subr.mxu0 0.0
        %893 = vmatpush1.msra.mxu0 0.0
        %894 = vmatprep.subr.mxu0 0.0
        %895 = vmatpush1.msra.mxu0 0.0
        %896 = vmatprep.subr.mxu0 0.0
        %897 = vmatpush1.msra.mxu0 0.0
        %898 = vmatprep.subr.mxu0 0.0
        %899 = vmatpush1.msra.mxu0 0.0
        %900 = vmatprep.subr.mxu0 0.0
        %901 = vmatpush1.msra.mxu0 0.0
        %902 = vmatprep.subr.mxu0 0.0
        %903 = vmatpush1.msra.mxu0 0.0
        %904 = vmatprep.subr.mxu0 0.0
        %905 = vmatpush1.msra.mxu0 0.0
        %906 = vmatprep.subr.mxu0 0.0
        %907 = vmatpush1.msra.mxu0 0.0
        %908 = vmatprep.subr.mxu0 0.0
        %909 = vmatpush1.msra.mxu0 0.0
        %910 = vmatprep.subr.mxu0 0.0
        %911 = vmatpush1.msra.mxu0 0.0
        %912 = vmatprep.subr.mxu0 0.0
        %913 = vmatpush1.msra.mxu0 0.0
        %914 = vmatprep.subr.mxu0 0.0
        %915 = vmatpush1.msra.mxu0 0.0
        %916 = vmatprep.subr.mxu0 0.0
        %917 = vmatpush1.msra.mxu0 0.0
        %918 = vmatprep.subr.mxu0 0.0
        %919 = vmatpush1.msra.mxu0 0.0
        %920 = vmatprep.subr.mxu0 0.0
        %921 = vmatpush1.msra.mxu0 0.0
        %922 = vmatprep.subr.mxu0 0.0
        %923 = vmatpush1.msra.mxu0 0.0
        %924 = vmatprep.mubr.f32.mxu0 0.0
        %925 = vmatmul.mubr.f32.gmra.mrb[0].mxu0 %v858
        %v926 = vpop.f32.mrb[0].mxu0
        %v927 = vadd.f32 %v855, %v926
        %v928 = vpop.f32.mrb[0].mxu0
        %929 = vdwg.mxu0
        %vm930 = vcmask 64512
        %v932 = vsel %vm930, %v759, 0
        %v935 = vsel %vm930, %v843, 0
        %937 = vmatprep.subr.mxu0 0.0
        %938 = vmatpush1.xpose.msra.mxu0 %v935
        %939 = vmatprep.subr.mxu0 0.0
        %940 = vmatpush1.xpose.msra.mxu0 0.0
        %941 = vmatprep.subr.mxu0 0.0
        %942 = vmatpush1.xpose.msra.mxu0 0.0
        %943 = vmatprep.subr.mxu0 0.0
        %944 = vmatpush1.xpose.msra.mxu0 0.0
        %945 = vmatprep.subr.mxu0 0.0
        %946 = vmatpush1.xpose.msra.mxu0 0.0
        %947 = vmatprep.subr.mxu0 0.0
        %948 = vmatpush1.xpose.msra.mxu0 0.0
        %949 = vmatprep.subr.mxu0 0.0
        %950 = vmatpush1.xpose.msra.mxu0 0.0
        %951 = vmatprep.subr.mxu0 0.0
        %952 = vmatpush1.xpose.msra.mxu0 0.0
        %953 = vmatprep.subr.mxu0 0.0
        %954 = vmatpush1.xpose.msra.mxu0 0.0
        %955 = vmatprep.subr.mxu0 0.0
        %956 = vmatpush1.xpose.msra.mxu0 0.0
        %957 = vmatprep.subr.mxu0 0.0
        %958 = vmatpush1.xpose.msra.mxu0 0.0
        %959 = vmatprep.subr.mxu0 0.0
        %960 = vmatpush1.xpose.msra.mxu0 0.0
        %961 = vmatprep.subr.mxu0 0.0
        %962 = vmatpush1.xpose.msra.mxu0 0.0
        %963 = vmatprep.subr.mxu0 0.0
        %964 = vmatpush1.xpose.msra.mxu0 0.0
        %965 = vmatprep.subr.mxu0 0.0
        %966 = vmatpush1.xpose.msra.mxu0 0.0
        %967 = vmatprep.subr.mxu0 0.0
        %968 = vmatpush1.xpose.msra.mxu0 0.0
        %969 = vmatprep.subr.mxu0 0.0
        %970 = vmatpush1.xpose.msra.mxu0 0.0
        %971 = vmatprep.subr.mxu0 0.0
        %972 = vmatpush1.xpose.msra.mxu0 0.0
        %973 = vmatprep.subr.mxu0 0.0
        %974 = vmatpush1.xpose.msra.mxu0 0.0
        %975 = vmatprep.subr.mxu0 0.0
        %976 = vmatpush1.xpose.msra.mxu0 0.0
        %977 = vmatprep.subr.mxu0 0.0
        %978 = vmatpush1.xpose.msra.mxu0 0.0
        %979 = vmatprep.subr.mxu0 0.0
        %980 = vmatpush1.xpose.msra.mxu0 0.0
        %981 = vmatprep.subr.mxu0 0.0
        %982 = vmatpush1.xpose.msra.mxu0 0.0
        %983 = vmatprep.subr.mxu0 0.0
        %984 = vmatpush1.xpose.msra.mxu0 0.0
        %985 = vmatprep.subr.mxu0 0.0
        %986 = vmatpush1.xpose.msra.mxu0 0.0
        %987 = vmatprep.subr.mxu0 0.0
        %988 = vmatpush1.xpose.msra.mxu0 0.0
        %989 = vmatprep.subr.mxu0 0.0
        %990 = vmatpush1.xpose.msra.mxu0 0.0
        %991 = vmatprep.subr.mxu0 0.0
        %992 = vmatpush1.xpose.msra.mxu0 0.0
        %993 = vmatprep.subr.mxu0 0.0
        %994 = vmatpush1.xpose.msra.mxu0 0.0
        %995 = vmatprep.subr.mxu0 0.0
        %996 = vmatpush1.xpose.msra.mxu0 0.0
        %997 = vmatprep.subr.mxu0 0.0
        %998 = vmatpush1.xpose.msra.mxu0 0.0
        %999 = vmatprep.subr.mxu0 0.0
        %1000 = vmatpush1.xpose.msra.mxu0 0.0
        %1001 = vmatprep.mubr.f32.mxu0 0.0
        %1002 = vmatmul.mubr.f32.gmra.mrb[0].mxu0 %v932
        %v1003 = vpop.f32.mrb[0].mxu0
        %v1004 = vadd.f32 0.0, %v1003
        %v1005 = vpop.f32.mrb[0].mxu0
        %1006 = vdwg.mxu0
        %v1007 = vmul.f32 %v1004, 0.35355338
        %v1008 = vsel %vm664, %v1007, -1e+32
        %v1009 = vsel %vm930, %v1008, -inf
        %1010 = vmax.xlane.f32.xlu0 %v1009
        %v1011 = vpop.xlane.xlu0 %1010
        %v1012 = vsub.f32 %v1008, %v1011
        %v1013 = vmul.f32 %v1012, 1.442695
        %v1014 = vpow.pop %v1013
        %v1015 = vsel %vm930, %v1014, 0.0
        %1016 = vadd.xlane.f32.xlu0 %v1015
        %v1017 = vpop.xlane.xlu0 %1016
        %v1018 = vrcp.pop %v1017
        %v1019 = vmul.f32 %v1014, %v1018
        %v1020 = vmul.f32 %v1019, %v663
        %v1022 = vsel %vm930, %v1020, 0
        %1024 = vmatprep.subr.mxu0 0.0
        %1025 = vmatpush1.msra.mxu0 %v671
        %1026 = vmatprep.subr.mxu0 0.0
        %1027 = vmatpush1.msra.mxu0 0.0
        %1028 = vmatprep.subr.mxu0 0.0
        %1029 = vmatpush1.msra.mxu0 0.0
        %1030 = vmatprep.subr.mxu0 0.0
        %1031 = vmatpush1.msra.mxu0 0.0
        %1032 = vmatprep.subr.mxu0 0.0
        %1033 = vmatpush1.msra.mxu0 0.0
        %1034 = vmatprep.subr.mxu0 0.0
        %1035 = vmatpush1.msra.mxu0 0.0
        %1036 = vmatprep.subr.mxu0 0.0
        %1037 = vmatpush1.msra.mxu0 0.0
        %1038 = vmatprep.subr.mxu0 0.0
        %1039 = vmatpush1.msra.mxu0 0.0
        %1040 = vmatprep.subr.mxu0 0.0
        %1041 = vmatpush1.msra.mxu0 0.0
        %1042 = vmatprep.subr.mxu0 0.0
        %1043 = vmatpush1.msra.mxu0 0.0
        %1044 = vmatprep.subr.mxu0 0.0
        %1045 = vmatpush1.msra.mxu0 0.0
        %1046 = vmatprep.subr.mxu0 0.0
        %1047 = vmatpush1.msra.mxu0 0.0
        %1048 = vmatprep.subr.mxu0 0.0
        %1049 = vmatpush1.msra.mxu0 0.0
        %1050 = vmatprep.subr.mxu0 0.0
        %1051 = vmatpush1.msra.mxu0 0.0
        %1052 = vmatprep.subr.mxu0 0.0
        %1053 = vmatpush1.msra.mxu0 0.0
        %1054 = vmatprep.subr.mxu0 0.0
        %1055 = vmatpush1.msra.mxu0 0.0
        %1056 = vmatprep.subr.mxu0 0.0
        %1057 = vmatpush1.msra.mxu0 0.0
        %1058 = vmatprep.subr.mxu0 0.0
        %1059 = vmatpush1.msra.mxu0 0.0
        %1060 = vmatprep.subr.mxu0 0.0
        %1061 = vmatpush1.msra.mxu0 0.0
        %1062 = vmatprep.subr.mxu0 0.0
        %1063 = vmatpush1.msra.mxu0 0.0
        %1064 = vmatprep.subr.mxu0 0.0
        %1065 = vmatpush1.msra.mxu0 0.0
        %1066 = vmatprep.subr.mxu0 0.0
        %1067 = vmatpush1.msra.mxu0 0.0
        %1068 = vmatprep.subr.mxu0 0.0
        %1069 = vmatpush1.msra.mxu0 0.0
        %1070 = vmatprep.subr.mxu0 0.0
        %1071 = vmatpush1.msra.mxu0 0.0
        %1072 = vmatprep.subr.mxu0 0.0
        %1073 = vmatpush1.msra.mxu0 0.0
        %1074 = vmatprep.subr.mxu0 0.0
        %1075 = vmatpush1.msra.mxu0 0.0
        %1076 = vmatprep.subr.mxu0 0.0
        %1077 = vmatpush1.msra.mxu0 0.0
        %1078 = vmatprep.subr.mxu0 0.0
        %1079 = vmatpush1.msra.mxu0 0.0
        %1080 = vmatprep.subr.mxu0 0.0
        %1081 = vmatpush1.msra.mxu0 0.0
        %1082 = vmatprep.subr.mxu0 0.0
        %1083 = vmatpush1.msra.mxu0 0.0
        %1084 = vmatprep.subr.mxu0 0.0
        %1085 = vmatpush1.msra.mxu0 0.0
        %1086 = vmatprep.subr.mxu0 0.0
        %1087 = vmatpush1.msra.mxu0 0.0
        %1088 = vmatprep.mubr.f32.mxu0 0.0
        %1089 = vmatmul.mubr.f32.gmra.mrb[0].mxu0 %v1022
        %v1090 = vpop.f32.mrb[0].mxu0
        %v1091 = vadd.f32 0.0, %v1090
        %v1092 = vpop.f32.mrb[0].mxu0
        %1093 = vdwg.mxu0
        %v1094 = vsel %vm930, %v1020, 0.0
        %1095 = vadd.xlane.f32.xlu0 %v1094
        %v1096 = vpop.xlane.xlu0 %1095
        %v1097 = vsub.f32 %v1096, %v1091
        %v1098 = vmul.f32 %v1097, %v676
        %v1099 = vmax.f32 %v1098, 0.0
        %v1100 = vrsqrt.pop %v1099
        %v1101 = vmul.f32 %v1099, %v1100
        %vm1102 = vcmp.eq.f32.partialorder %v1099, inf
        %v1103 = vsel %vm1102, %v1099, %v1101
        %vm1104 = vcmp.eq.f32.partialorder %v1099, 0.0
        %v1105 = vand.u32 %v1099, 2147483648
        %v1106 = vsel %vm1104, %v1105, %v1103
        %s1107 = sld [smem:[#allocation19]]
        %v1108 = vstv %s1107
        %v1109 = vmul.f32 %v1106, %v1108
        %v1110 = vmul.f32 %v1109, 1.442695
        %v1111 = vpow.pop %v1110
        %v1112 = vmax.f32 %v1111, 1e-05
        %v1113 = vmin.f32 %v1112, 100000.0
        %v1114 = vmul.f32 %v1007, %v1113
        %v1115 = vsel %vm664, %v1114, -1e+32
        %v1116 = vsel %vm930, %v1115, -inf
        %1117 = vmax.xlane.f32.xlu0 %v1116
        %v1118 = vpop.xlane.xlu0 %1117
        %v1119 = vsub.f32 %v1115, %v1118
        %v1120 = vmul.f32 %v1119, 1.442695
        %v1121 = vpow.pop %v1120
        %v1122 = vsel %vm930, %v1121, 0.0
        %1123 = vadd.xlane.f32.xlu0 %v1122
        %v1124 = vpop.xlane.xlu0 %1123
        %v1125 = vrcp.pop %v1124
        %v1126 = vmul.f32 %v1121, %v1125
        %1127 = vst.msk [vmem:[%s659] sm:$0xff] %vm930, %v1126
        %v1129 = vsel %vm930, %v1126, 0
        %1131 = vmatprep.subr.mxu0 0.0
        %1132 = vmatpush1.msra.mxu0 %v927
        %1133 = vmatprep.subr.mxu0 0.0
        %1134 = vmatpush1.msra.mxu0 0.0
        %1135 = vmatprep.subr.mxu0 0.0
        %1136 = vmatpush1.msra.mxu0 0.0
        %1137 = vmatprep.subr.mxu0 0.0
        %1138 = vmatpush1.msra.mxu0 0.0
        %1139 = vmatprep.subr.mxu0 0.0
        %1140 = vmatpush1.msra.mxu0 0.0
        %1141 = vmatprep.subr.mxu0 0.0
        %1142 = vmatpush1.msra.mxu0 0.0
        %1143 = vmatprep.subr.mxu0 0.0
        %1144 = vmatpush1.msra.mxu0 0.0
        %1145 = vmatprep.subr.mxu0 0.0
        %1146 = vmatpush1.msra.mxu0 0.0
        %1147 = vmatprep.subr.mxu0 0.0
        %1148 = vmatpush1.msra.mxu0 0.0
        %1149 = vmatprep.subr.mxu0 0.0
        %1150 = vmatpush1.msra.mxu0 0.0
        %1151 = vmatprep.subr.mxu0 0.0
        %1152 = vmatpush1.msra.mxu0 0.0
        %1153 = vmatprep.subr.mxu0 0.0
        %1154 = vmatpush1.msra.mxu0 0.0
        %1155 = vmatprep.subr.mxu0 0.0
        %1156 = vmatpush1.msra.mxu0 0.0
        %1157 = vmatprep.subr.mxu0 0.0
        %1158 = vmatpush1.msra.mxu0 0.0
        %1159 = vmatprep.subr.mxu0 0.0
        %1160 = vmatpush1.msra.mxu0 0.0
        %1161 = vmatprep.subr.mxu0 0.0
        %1162 = vmatpush1.msra.mxu0 0.0
        %1163 = vmatprep.subr.mxu0 0.0
        %1164 = vmatpush1.msra.mxu0 0.0
        %1165 = vmatprep.subr.mxu0 0.0
        %1166 = vmatpush1.msra.mxu0 0.0
        %1167 = vmatprep.subr.mxu0 0.0
        %1168 = vmatpush1.msra.mxu0 0.0
        %1169 = vmatprep.subr.mxu0 0.0
        %1170 = vmatpush1.msra.mxu0 0.0
        %1171 = vmatprep.subr.mxu0 0.0
        %1172 = vmatpush1.msra.mxu0 0.0
        %1173 = vmatprep.subr.mxu0 0.0
        %1174 = vmatpush1.msra.mxu0 0.0
        %1175 = vmatprep.subr.mxu0 0.0
        %1176 = vmatpush1.msra.mxu0 0.0
        %1177 = vmatprep.subr.mxu0 0.0
        %1178 = vmatpush1.msra.mxu0 0.0
        %1179 = vmatprep.subr.mxu0 0.0
        %1180 = vmatpush1.msra.mxu0 0.0
        %1181 = vmatprep.subr.mxu0 0.0
        %1182 = vmatpush1.msra.mxu0 0.0
        %1183 = vmatprep.subr.mxu0 0.0
        %1184 = vmatpush1.msra.mxu0 0.0
        %1185 = vmatprep.subr.mxu0 0.0
        %1186 = vmatpush1.msra.mxu0 0.0
        %1187 = vmatprep.subr.mxu0 0.0
        %1188 = vmatpush1.msra.mxu0 0.0
        %1189 = vmatprep.subr.mxu0 0.0
        %1190 = vmatpush1.msra.mxu0 0.0
        %1191 = vmatprep.subr.mxu0 0.0
        %1192 = vmatpush1.msra.mxu0 0.0
        %1193 = vmatprep.subr.mxu0 0.0
        %1194 = vmatpush1.msra.mxu0 0.0
        %1195 = vmatprep.mubr.f32.mxu0 0.0
        %1196 = vmatmul.mubr.f32.gmra.mrb[0].mxu0 %v1129
        %v1197 = vpop.f32.mrb[0].mxu0
        %v1198 = vadd.f32 0.0, %v1197
        %v1199 = vpop.f32.mrb[0].mxu0
        %1200 = vdwg.mxu0
        %1201 = vst.msk [vmem:[#allocation2] sm:$0xff] %vm930, %v1198
        %1202 = vrot.lane.b32.xlu0 %v759, 120
        %v1203 = vpop.permute.xlu0 %1202
        %1204 = vrot.lane.b32.xlu0 %v843, 120
        %v1205 = vpop.permute.xlu0 %1204
        %v1206 = vsel %vm930, %v1203, 0
        %v1208 = vsel %vm930, %v1205, 0
        %1210 = vmatprep.subr.mxu0 0.0
        %1211 = vmatpush1.xpose.msra.mxu0 %v1208
        %1212 = vmatprep.subr.mxu0 0.0
        %1213 = vmatpush1.xpose.msra.mxu0 0.0
        %1214 = vmatprep.subr.mxu0 0.0
        %1215 = vmatpush1.xpose.msra.mxu0 0.0
        %1216 = vmatprep.subr.mxu0 0.0
        %1217 = vmatpush1.xpose.msra.mxu0 0.0
        %1218 = vmatprep.subr.mxu0 0.0
        %1219 = vmatpush1.xpose.msra.mxu0 0.0
        %1220 = vmatprep.subr.mxu0 0.0
        %1221 = vmatpush1.xpose.msra.mxu0 0.0
        %1222 = vmatprep.subr.mxu0 0.0
        %1223 = vmatpush1.xpose.msra.mxu0 0.0
        %1224 = vmatprep.subr.mxu0 0.0
        %1225 = vmatpush1.xpose.msra.mxu0 0.0
        %1226 = vmatprep.subr.mxu0 0.0
        %1227 = vmatpush1.xpose.msra.mxu0 0.0
        %1228 = vmatprep.subr.mxu0 0.0
        %1229 = vmatpush1.xpose.msra.mxu0 0.0
        %1230 = vmatprep.subr.mxu0 0.0
        %1231 = vmatpush1.xpose.msra.mxu0 0.0
        %1232 = vmatprep.subr.mxu0 0.0
        %1233 = vmatpush1.xpose.msra.mxu0 0.0
        %1234 = vmatprep.subr.mxu0 0.0
        %1235 = vmatpush1.xpose.msra.mxu0 0.0
        %1236 = vmatprep.subr.mxu0 0.0
        %1237 = vmatpush1.xpose.msra.mxu0 0.0
        %1238 = vmatprep.subr.mxu0 0.0
        %1239 = vmatpush1.xpose.msra.mxu0 0.0
        %1240 = vmatprep.subr.mxu0 0.0
        %1241 = vmatpush1.xpose.msra.mxu0 0.0
        %1242 = vmatprep.subr.mxu0 0.0
        %1243 = vmatpush1.xpose.msra.mxu0 0.0
        %1244 = vmatprep.subr.mxu0 0.0
        %1245 = vmatpush1.xpose.msra.mxu0 0.0
        %1246 = vmatprep.subr.mxu0 0.0
        %1247 = vmatpush1.xpose.msra.mxu0 0.0
        %1248 = vmatprep.subr.mxu0 0.0
        %1249 = vmatpush1.xpose.msra.mxu0 0.0
        %1250 = vmatprep.subr.mxu0 0.0
        %1251 = vmatpush1.xpose.msra.mxu0 0.0
        %1252 = vmatprep.subr.mxu0 0.0
        %1253 = vmatpush1.xpose.msra.mxu0 0.0
        %1254 = vmatprep.subr.mxu0 0.0
        %1255 = vmatpush1.xpose.msra.mxu0 0.0
        %1256 = vmatprep.subr.mxu0 0.0
        %1257 = vmatpush1.xpose.msra.mxu0 0.0
        %1258 = vmatprep.subr.mxu0 0.0
        %1259 = vmatpush1.xpose.msra.mxu0 0.0
        %1260 = vmatprep.subr.mxu0 0.0
        %1261 = vmatpush1.xpose.msra.mxu0 0.0
        %1262 = vmatprep.subr.mxu0 0.0
        %1263 = vmatpush1.xpose.msra.mxu0 0.0
        %1264 = vmatprep.subr.mxu0 0.0
        %1265 = vmatpush1.xpose.msra.mxu0 0.0
        %1266 = vmatprep.subr.mxu0 0.0
        %1267 = vmatpush1.xpose.msra.mxu0 0.0
        %1268 = vmatprep.subr.mxu0 0.0
        %1269 = vmatpush1.xpose.msra.mxu0 0.0
        %1270 = vmatprep.subr.mxu0 0.0
        %1271 = vmatpush1.xpose.msra.mxu0 0.0
        %1272 = vmatprep.subr.mxu0 0.0
        %1273 = vmatpush1.xpose.msra.mxu0 0.0
        %1274 = vmatprep.mubr.f32.mxu0 0.0
        %1275 = vmatmul.mubr.f32.gmra.mrb[0].mxu0 %v1206
        %v1276 = vpop.f32.mrb[0].mxu0
        %v1277 = vadd.f32 0.0, %v1276
        %v1278 = vpop.f32.mrb[0].mxu0
        %1279 = vdwg.mxu0
        %v1280 = vmul.f32 %v1277, 0.35355338
        %v1281 = vsel %vm664, %v1280, -1e+32
        %v1282 = vsel %vm930, %v1281, -inf
        %1283 = vmax.xlane.f32.xlu0 %v1282
        %v1284 = vpop.xlane.xlu0 %1283
        %v1285 = vsub.f32 %v1281, %v1284
        %v1286 = vmul.f32 %v1285, 1.442695
        %v1287 = vpow.pop %v1286
        %v1288 = vsel %vm930, %v1287, 0.0
        %1289 = vadd.xlane.f32.xlu0 %v1288
        %v1290 = vpop.xlane.xlu0 %1289
        %v1291 = vrcp.pop %v1290
        %v1292 = vmul.f32 %v1287, %v1291
        %v1293 = vmul.f32 %v1292, %v663
        %v1295 = vsel %vm930, %v1293, 0
        %1297 = vmatprep.subr.mxu0 0.0
        %1298 = vmatpush1.msra.mxu0 %v671
        %1299 = vmatprep.subr.mxu0 0.0
        %1300 = vmatpush1.msra.mxu0 0.0
        %1301 = vmatprep.subr.mxu0 0.0
        %1302 = vmatpush1.msra.mxu0 0.0
        %1303 = vmatprep.subr.mxu0 0.0
        %1304 = vmatpush1.msra.mxu0 0.0
        %1305 = vmatprep.subr.mxu0 0.0
        %1306 = vmatpush1.msra.mxu0 0.0
        %1307 = vmatprep.subr.mxu0 0.0
        %1308 = vmatpush1.msra.mxu0 0.0
        %1309 = vmatprep.subr.mxu0 0.0
        %1310 = vmatpush1.msra.mxu0 0.0
        %1311 = vmatprep.subr.mxu0 0.0
        %1312 = vmatpush1.msra.mxu0 0.0
        %1313 = vmatprep.subr.mxu0 0.0
        %1314 = vmatpush1.msra.mxu0 0.0
        %1315 = vmatprep.subr.mxu0 0.0
        %1316 = vmatpush1.msra.mxu0 0.0
        %1317 = vmatprep.subr.mxu0 0.0
        %1318 = vmatpush1.msra.mxu0 0.0
        %1319 = vmatprep.subr.mxu0 0.0
        %1320 = vmatpush1.msra.mxu0 0.0
        %1321 = vmatprep.subr.mxu0 0.0
        %1322 = vmatpush1.msra.mxu0 0.0
        %1323 = vmatprep.subr.mxu0 0.0
        %1324 = vmatpush1.msra.mxu0 0.0
        %1325 = vmatprep.subr.mxu0 0.0
        %1326 = vmatpush1.msra.mxu0 0.0
        %1327 = vmatprep.subr.mxu0 0.0
        %1328 = vmatpush1.msra.mxu0 0.0
        %1329 = vmatprep.subr.mxu0 0.0
        %1330 = vmatpush1.msra.mxu0 0.0
        %1331 = vmatprep.subr.mxu0 0.0
        %1332 = vmatpush1.msra.mxu0 0.0
        %1333 = vmatprep.subr.mxu0 0.0
        %1334 = vmatpush1.msra.mxu0 0.0
        %1335 = vmatprep.subr.mxu0 0.0
        %1336 = vmatpush1.msra.mxu0 0.0
        %1337 = vmatprep.subr.mxu0 0.0
        %1338 = vmatpush1.msra.mxu0 0.0
        %1339 = vmatprep.subr.mxu0 0.0
        %1340 = vmatpush1.msra.mxu0 0.0
        %1341 = vmatprep.subr.mxu0 0.0
        %1342 = vmatpush1.msra.mxu0 0.0
        %1343 = vmatprep.subr.mxu0 0.0
        %1344 = vmatpush1.msra.mxu0 0.0
        %1345 = vmatprep.subr.mxu0 0.0
        %1346 = vmatpush1.msra.mxu0 0.0
        %1347 = vmatprep.subr.mxu0 0.0
        %1348 = vmatpush1.msra.mxu0 0.0
        %1349 = vmatprep.subr.mxu0 0.0
        %1350 = vmatpush1.msra.mxu0 0.0
        %1351 = vmatprep.subr.mxu0 0.0
        %1352 = vmatpush1.msra.mxu0 0.0
        %1353 = vmatprep.subr.mxu0 0.0
        %1354 = vmatpush1.msra.mxu0 0.0
        %1355 = vmatprep.subr.mxu0 0.0
        %1356 = vmatpush1.msra.mxu0 0.0
        %1357 = vmatprep.subr.mxu0 0.0
        %1358 = vmatpush1.msra.mxu0 0.0
        %1359 = vmatprep.subr.mxu0 0.0
        %1360 = vmatpush1.msra.mxu0 0.0
        %1361 = vmatprep.mubr.f32.mxu0 0.0
        %1362 = vmatmul.mubr.f32.gmra.mrb[0].mxu0 %v1295
        %v1363 = vpop.f32.mrb[0].mxu0
        %v1364 = vadd.f32 0.0, %v1363
        %v1365 = vpop.f32.mrb[0].mxu0
        %1366 = vdwg.mxu0
        %v1367 = vsel %vm930, %v1293, 0.0
        %1368 = vadd.xlane.f32.xlu0 %v1367
        %v1369 = vpop.xlane.xlu0 %1368
        %v1370 = vsub.f32 %v1369, %v1364
        %v1371 = vmul.f32 %v1370, %v676
        %v1372 = vmax.f32 %v1371, 0.0
        %v1373 = vrsqrt.pop %v1372
        %v1374 = vmul.f32 %v1372, %v1373
        %vm1375 = vcmp.eq.f32.partialorder %v1372, inf
        %v1376 = vsel %vm1375, %v1372, %v1374
        %vm1377 = vcmp.eq.f32.partialorder %v1372, 0.0
        %v1378 = vand.u32 %v1372, 2147483648
        %v1379 = vsel %vm1377, %v1378, %v1376
        %s1380 = sld [smem:[#allocation19 + $0x1]]
        %v1381 = vstv %s1380
        %v1382 = vmul.f32 %v1379, %v1381
        %v1383 = vmul.f32 %v1382, 1.442695
        %v1384 = vpow.pop %v1383
        %v1385 = vmax.f32 %v1384, 1e-05
        %v1386 = vmin.f32 %v1385, 100000.0
        %v1387 = vmul.f32 %v1280, %v1386
        %v1388 = vsel %vm664, %v1387, -1e+32
        %v1389 = vsel %vm930, %v1388, -inf
        %1390 = vmax.xlane.f32.xlu0 %v1389
        %v1391 = vpop.xlane.xlu0 %1390
        %v1392 = vsub.f32 %v1388, %v1391
        %v1393 = vmul.f32 %v1392, 1.442695
        %v1394 = vpow.pop %v1393
        %v1395 = vsel %vm930, %v1394, 0.0
        %1396 = vadd.xlane.f32.xlu0 %v1395
        %v1397 = vpop.xlane.xlu0 %1396
        %v1398 = vrcp.pop %v1397
        %v1399 = vmul.f32 %v1394, %v1398
        %s1400 = scalar_lea.vmem %s659, 8 [#allocation21]
        %1401 = vst.msk [vmem:[%s1400] sm:$0xff] %vm930, %v1399
        %1403 = vrot.lane.b32.xlu0 %v927, 120
        %v1404 = vpop.permute.xlu0 %1403
        %v1407 = vsel %vm930, %v1399, 0
        %1409 = vmatprep.subr.mxu0 0.0
        %1410 = vmatpush1.msra.mxu0 %v1404
        %1411 = vmatprep.subr.mxu0 0.0
        %1412 = vmatpush1.msra.mxu0 0.0
        %1413 = vmatprep.subr.mxu0 0.0
        %1414 = vmatpush1.msra.mxu0 0.0
        %1415 = vmatprep.subr.mxu0 0.0
        %1416 = vmatpush1.msra.mxu0 0.0
        %1417 = vmatprep.subr.mxu0 0.0
        %1418 = vmatpush1.msra.mxu0 0.0
        %1419 = vmatprep.subr.mxu0 0.0
        %1420 = vmatpush1.msra.mxu0 0.0
        %1421 = vmatprep.subr.mxu0 0.0
        %1422 = vmatpush1.msra.mxu0 0.0
        %1423 = vmatprep.subr.mxu0 0.0
        %1424 = vmatpush1.msra.mxu0 0.0
        %1425 = vmatprep.subr.mxu0 0.0
        %1426 = vmatpush1.msra.mxu0 0.0
        %1427 = vmatprep.subr.mxu0 0.0
        %1428 = vmatpush1.msra.mxu0 0.0
        %1429 = vmatprep.subr.mxu0 0.0
        %1430 = vmatpush1.msra.mxu0 0.0
        %1431 = vmatprep.subr.mxu0 0.0
        %1432 = vmatpush1.msra.mxu0 0.0
        %1433 = vmatprep.subr.mxu0 0.0
        %1434 = vmatpush1.msra.mxu0 0.0
        %1435 = vmatprep.subr.mxu0 0.0
        %1436 = vmatpush1.msra.mxu0 0.0
        %1437 = vmatprep.subr.mxu0 0.0
        %1438 = vmatpush1.msra.mxu0 0.0
        %1439 = vmatprep.subr.mxu0 0.0
        %1440 = vmatpush1.msra.mxu0 0.0
        %1441 = vmatprep.subr.mxu0 0.0
        %1442 = vmatpush1.msra.mxu0 0.0
        %1443 = vmatprep.subr.mxu0 0.0
        %1444 = vmatpush1.msra.mxu0 0.0
        %1445 = vmatprep.subr.mxu0 0.0
        %1446 = vmatpush1.msra.mxu0 0.0
        %1447 = vmatprep.subr.mxu0 0.0
        %1448 = vmatpush1.msra.mxu0 0.0
        %1449 = vmatprep.subr.mxu0 0.0
        %1450 = vmatpush1.msra.mxu0 0.0
        %1451 = vmatprep.subr.mxu0 0.0
        %1452 = vmatpush1.msra.mxu0 0.0
        %1453 = vmatprep.subr.mxu0 0.0
        %1454 = vmatpush1.msra.mxu0 0.0
        %1455 = vmatprep.subr.mxu0 0.0
        %1456 = vmatpush1.msra.mxu0 0.0
        %1457 = vmatprep.subr.mxu0 0.0
        %1458 = vmatpush1.msra.mxu0 0.0
        %1459 = vmatprep.subr.mxu0 0.0
        %1460 = vmatpush1.msra.mxu0 0.0
        %1461 = vmatprep.subr.mxu0 0.0
        %1462 = vmatpush1.msra.mxu0 0.0
        %1463 = vmatprep.subr.mxu0 0.0
        %1464 = vmatpush1.msra.mxu0 0.0
        %1465 = vmatprep.subr.mxu0 0.0
        %1466 = vmatpush1.msra.mxu0 0.0
        %1467 = vmatprep.subr.mxu0 0.0
        %1468 = vmatpush1.msra.mxu0 0.0
        %1469 = vmatprep.subr.mxu0 0.0
        %1470 = vmatpush1.msra.mxu0 0.0
        %1471 = vmatprep.subr.mxu0 0.0
        %1472 = vmatpush1.msra.mxu0 0.0
        %1473 = vmatprep.mubr.f32.mxu0 0.0
        %1474 = vmatmul.mubr.f32.gmra.mrb[0].mxu0 %v1407
        %v1475 = vpop.f32.mrb[0].mxu0
        %v1476 = vadd.f32 0.0, %v1475
        %v1477 = vpop.f32.mrb[0].mxu0
        %1478 = vdwg.mxu0
        %1480 = vrot.lane.b32.xlu0 %v1476, 8
        %v1481 = vpop.permute.xlu0 %1480
        %vm1483 = vcmask 130112
        %1484 = vst.msk [vmem:[#allocation2] sm:$0xff] %vm1483, %v1481
        %1485 = vrot.lane.b32.xlu0 %v759, 112
        %v1486 = vpop.permute.xlu0 %1485
        %1487 = vrot.lane.b32.xlu0 %v843, 112
        %v1488 = vpop.permute.xlu0 %1487
        %v1489 = vsel %vm930, %v1486, 0
        %v1491 = vsel %vm930, %v1488, 0
        %1493 = vmatprep.subr.mxu0 0.0
        %1494 = vmatpush1.xpose.msra.mxu0 %v1491
        %1495 = vmatprep.subr.mxu0 0.0
        %1496 = vmatpush1.xpose.msra.mxu0 0.0
        %1497 = vmatprep.subr.mxu0 0.0
        %1498 = vmatpush1.xpose.msra.mxu0 0.0
        %1499 = vmatprep.subr.mxu0 0.0
        %1500 = vmatpush1.xpose.msra.mxu0 0.0
        %1501 = vmatprep.subr.mxu0 0.0
        %1502 = vmatpush1.xpose.msra.mxu0 0.0
        %1503 = vmatprep.subr.mxu0 0.0
        %1504 = vmatpush1.xpose.msra.mxu0 0.0
        %1505 = vmatprep.subr.mxu0 0.0
        %1506 = vmatpush1.xpose.msra.mxu0 0.0
        %1507 = vmatprep.subr.mxu0 0.0
        %1508 = vmatpush1.xpose.msra.mxu0 0.0
        %1509 = vmatprep.subr.mxu0 0.0
        %1510 = vmatpush1.xpose.msra.mxu0 0.0
        %1511 = vmatprep.subr.mxu0 0.0
        %1512 = vmatpush1.xpose.msra.mxu0 0.0
        %1513 = vmatprep.subr.mxu0 0.0
        %1514 = vmatpush1.xpose.msra.mxu0 0.0
        %1515 = vmatprep.subr.mxu0 0.0
        %1516 = vmatpush1.xpose.msra.mxu0 0.0
        %1517 = vmatprep.subr.mxu0 0.0
        %1518 = vmatpush1.xpose.msra.mxu0 0.0
        %1519 = vmatprep.subr.mxu0 0.0
        %1520 = vmatpush1.xpose.msra.mxu0 0.0
        %1521 = vmatprep.subr.mxu0 0.0
        %1522 = vmatpush1.xpose.msra.mxu0 0.0
        %1523 = vmatprep.subr.mxu0 0.0
        %1524 = vmatpush1.xpose.msra.mxu0 0.0
        %1525 = vmatprep.subr.mxu0 0.0
        %1526 = vmatpush1.xpose.msra.mxu0 0.0
        %1527 = vmatprep.subr.mxu0 0.0
        %1528 = vmatpush1.xpose.msra.mxu0 0.0
        %1529 = vmatprep.subr.mxu0 0.0
        %1530 = vmatpush1.xpose.msra.mxu0 0.0
        %1531 = vmatprep.subr.mxu0 0.0
        %1532 = vmatpush1.xpose.msra.mxu0 0.0
        %1533 = vmatprep.subr.mxu0 0.0
        %1534 = vmatpush1.xpose.msra.mxu0 0.0
        %1535 = vmatprep.subr.mxu0 0.0
        %1536 = vmatpush1.xpose.msra.mxu0 0.0
        %1537 = vmatprep.subr.mxu0 0.0
        %1538 = vmatpush1.xpose.msra.mxu0 0.0
        %1539 = vmatprep.subr.mxu0 0.0
        %1540 = vmatpush1.xpose.msra.mxu0 0.0
        %1541 = vmatprep.subr.mxu0 0.0
        %1542 = vmatpush1.xpose.msra.mxu0 0.0
        %1543 = vmatprep.subr.mxu0 0.0
        %1544 = vmatpush1.xpose.msra.mxu0 0.0
        %1545 = vmatprep.subr.mxu0 0.0
        %1546 = vmatpush1.xpose.msra.mxu0 0.0
        %1547 = vmatprep.subr.mxu0 0.0
        %1548 = vmatpush1.xpose.msra.mxu0 0.0
        %1549 = vmatprep.subr.mxu0 0.0
        %1550 = vmatpush1.xpose.msra.mxu0 0.0
        %1551 = vmatprep.subr.mxu0 0.0
        %1552 = vmatpush1.xpose.msra.mxu0 0.0
        %1553 = vmatprep.subr.mxu0 0.0
        %1554 = vmatpush1.xpose.msra.mxu0 0.0
        %1555 = vmatprep.subr.mxu0 0.0
        %1556 = vmatpush1.xpose.msra.mxu0 0.0
        %1557 = vmatprep.mubr.f32.mxu0 0.0
        %1558 = vmatmul.mubr.f32.gmra.mrb[0].mxu0 %v1489
        %v1559 = vpop.f32.mrb[0].mxu0
        %v1560 = vadd.f32 0.0, %v1559
        %v1561 = vpop.f32.mrb[0].mxu0
        %1562 = vdwg.mxu0
        %v1563 = vmul.f32 %v1560, 0.35355338
        %v1564 = vsel %vm664, %v1563, -1e+32
        %v1565 = vsel %vm930, %v1564, -inf
        %1566 = vmax.xlane.f32.xlu0 %v1565
        %v1567 = vpop.xlane.xlu0 %1566
        %v1568 = vsub.f32 %v1564, %v1567
        %v1569 = vmul.f32 %v1568, 1.442695
        %v1570 = vpow.pop %v1569
        %v1571 = vsel %vm930, %v1570, 0.0
        %1572 = vadd.xlane.f32.xlu0 %v1571
        %v1573 = vpop.xlane.xlu0 %1572
        %v1574 = vrcp.pop %v1573
        %v1575 = vmul.f32 %v1570, %v1574
        %v1576 = vmul.f32 %v1575, %v663
        %v1578 = vsel %vm930, %v1576, 0
        %1580 = vmatprep.subr.mxu0 0.0
        %1581 = vmatpush1.msra.mxu0 %v671
        %1582 = vmatprep.subr.mxu0 0.0
        %1583 = vmatpush1.msra.mxu0 0.0
        %1584 = vmatprep.subr.mxu0 0.0
        %1585 = vmatpush1.msra.mxu0 0.0
        %1586 = vmatprep.subr.mxu0 0.0
        %1587 = vmatpush1.msra.mxu0 0.0
        %1588 = vmatprep.subr.mxu0 0.0
        %1589 = vmatpush1.msra.mxu0 0.0
        %1590 = vmatprep.subr.mxu0 0.0
        %1591 = vmatpush1.msra.mxu0 0.0
        %1592 = vmatprep.subr.mxu0 0.0
        %1593 = vmatpush1.msra.mxu0 0.0
        %1594 = vmatprep.subr.mxu0 0.0
        %1595 = vmatpush1.msra.mxu0 0.0
        %1596 = vmatprep.subr.mxu0 0.0
        %1597 = vmatpush1.msra.mxu0 0.0
        %1598 = vmatprep.subr.mxu0 0.0
        %1599 = vmatpush1.msra.mxu0 0.0
        %1600 = vmatprep.subr.mxu0 0.0
        %1601 = vmatpush1.msra.mxu0 0.0
        %1602 = vmatprep.subr.mxu0 0.0
        %1603 = vmatpush1.msra.mxu0 0.0
        %1604 = vmatprep.subr.mxu0 0.0
        %1605 = vmatpush1.msra.mxu0 0.0
        %1606 = vmatprep.subr.mxu0 0.0
        %1607 = vmatpush1.msra.mxu0 0.0
        %1608 = vmatprep.subr.mxu0 0.0
        %1609 = vmatpush1.msra.mxu0 0.0
        %1610 = vmatprep.subr.mxu0 0.0
        %1611 = vmatpush1.msra.mxu0 0.0
        %1612 = vmatprep.subr.mxu0 0.0
        %1613 = vmatpush1.msra.mxu0 0.0
        %1614 = vmatprep.subr.mxu0 0.0
        %1615 = vmatpush1.msra.mxu0 0.0
        %1616 = vmatprep.subr.mxu0 0.0
        %1617 = vmatpush1.msra.mxu0 0.0
        %1618 = vmatprep.subr.mxu0 0.0
        %1619 = vmatpush1.msra.mxu0 0.0
        %1620 = vmatprep.subr.mxu0 0.0
        %1621 = vmatpush1.msra.mxu0 0.0
        %1622 = vmatprep.subr.mxu0 0.0
        %1623 = vmatpush1.msra.mxu0 0.0
        %1624 = vmatprep.subr.mxu0 0.0
        %1625 = vmatpush1.msra.mxu0 0.0
        %1626 = vmatprep.subr.mxu0 0.0
        %1627 = vmatpush1.msra.mxu0 0.0
        %1628 = vmatprep.subr.mxu0 0.0
        %1629 = vmatpush1.msra.mxu0 0.0
        %1630 = vmatprep.subr.mxu0 0.0
        %1631 = vmatpush1.msra.mxu0 0.0
        %1632 = vmatprep.subr.mxu0 0.0
        %1633 = vmatpush1.msra.mxu0 0.0
        %1634 = vmatprep.subr.mxu0 0.0
        %1635 = vmatpush1.msra.mxu0 0.0
        %1636 = vmatprep.subr.mxu0 0.0
        %1637 = vmatpush1.msra.mxu0 0.0
        %1638 = vmatprep.subr.mxu0 0.0
        %1639 = vmatpush1.msra.mxu0 0.0
        %1640 = vmatprep.subr.mxu0 0.0
        %1641 = vmatpush1.msra.mxu0 0.0
        %1642 = vmatprep.subr.mxu0 0.0
        %1643 = vmatpush1.msra.mxu0 0.0
        %1644 = vmatprep.mubr.f32.mxu0 0.0
        %1645 = vmatmul.mubr.f32.gmra.mrb[0].mxu0 %v1578
        %v1646 = vpop.f32.mrb[0].mxu0
        %v1647 = vadd.f32 0.0, %v1646
        %v1648 = vpop.f32.mrb[0].mxu0
        %1649 = vdwg.mxu0
        %v1650 = vsel %vm930, %v1576, 0.0
        %1651 = vadd.xlane.f32.xlu0 %v1650
        %v1652 = vpop.xlane.xlu0 %1651
        %v1653 = vsub.f32 %v1652, %v1647
        %v1654 = vmul.f32 %v1653, %v676
        %v1655 = vmax.f32 %v1654, 0.0
        %v1656 = vrsqrt.pop %v1655
        %v1657 = vmul.f32 %v1655, %v1656
        %vm1658 = vcmp.eq.f32.partialorder %v1655, inf
        %v1659 = vsel %vm1658, %v1655, %v1657
        %vm1660 = vcmp.eq.f32.partialorder %v1655, 0.0
        %v1661 = vand.u32 %v1655, 2147483648
        %v1662 = vsel %vm1660, %v1661, %v1659
        %s1663 = sld [smem:[#allocation19 + $0x2]]
        %v1664 = vstv %s1663
        %v1665 = vmul.f32 %v1662, %v1664
        %v1666 = vmul.f32 %v1665, 1.442695
        %v1667 = vpow.pop %v1666
        %v1668 = vmax.f32 %v1667, 1e-05
        %v1669 = vmin.f32 %v1668, 100000.0
        %v1670 = vmul.f32 %v1563, %v1669
        %v1671 = vsel %vm664, %v1670, -1e+32
        %v1672 = vsel %vm930, %v1671, -inf
        %1673 = vmax.xlane.f32.xlu0 %v1672
        %v1674 = vpop.xlane.xlu0 %1673
        %v1675 = vsub.f32 %v1671, %v1674
        %v1676 = vmul.f32 %v1675, 1.442695
        %v1677 = vpow.pop %v1676
        %v1678 = vsel %vm930, %v1677, 0.0
        %1679 = vadd.xlane.f32.xlu0 %v1678
        %v1680 = vpop.xlane.xlu0 %1679
        %v1681 = vrcp.pop %v1680
        %v1682 = vmul.f32 %v1677, %v1681
        %s1683 = scalar_lea.vmem %s659, 16 [#allocation21]
        %1684 = vst.msk [vmem:[%s1683] sm:$0xff] %vm930, %v1682
        %1685 = vrot.lane.b32.xlu0 %v927, 112
        %v1686 = vpop.permute.xlu0 %1685
        %v1689 = vsel %vm930, %v1682, 0
        %1691 = vmatprep.subr.mxu0 0.0
        %1692 = vmatpush1.msra.mxu0 %v1686
        %1693 = vmatprep.subr.mxu0 0.0
        %1694 = vmatpush1.msra.mxu0 0.0
        %1695 = vmatprep.subr.mxu0 0.0
        %1696 = vmatpush1.msra.mxu0 0.0
        %1697 = vmatprep.subr.mxu0 0.0
        %1698 = vmatpush1.msra.mxu0 0.0
        %1699 = vmatprep.subr.mxu0 0.0
        %1700 = vmatpush1.msra.mxu0 0.0
        %1701 = vmatprep.subr.mxu0 0.0
        %1702 = vmatpush1.msra.mxu0 0.0
        %1703 = vmatprep.subr.mxu0 0.0
        %1704 = vmatpush1.msra.mxu0 0.0
        %1705 = vmatprep.subr.mxu0 0.0
        %1706 = vmatpush1.msra.mxu0 0.0
        %1707 = vmatprep.subr.mxu0 0.0
        %1708 = vmatpush1.msra.mxu0 0.0
        %1709 = vmatprep.subr.mxu0 0.0
        %1710 = vmatpush1.msra.mxu0 0.0
        %1711 = vmatprep.subr.mxu0 0.0
        %1712 = vmatpush1.msra.mxu0 0.0
        %1713 = vmatprep.subr.mxu0 0.0
        %1714 = vmatpush1.msra.mxu0 0.0
        %1715 = vmatprep.subr.mxu0 0.0
        %1716 = vmatpush1.msra.mxu0 0.0
        %1717 = vmatprep.subr.mxu0 0.0
        %1718 = vmatpush1.msra.mxu0 0.0
        %1719 = vmatprep.subr.mxu0 0.0
        %1720 = vmatpush1.msra.mxu0 0.0
        %1721 = vmatprep.subr.mxu0 0.0
        %1722 = vmatpush1.msra.mxu0 0.0
        %1723 = vmatprep.subr.mxu0 0.0
        %1724 = vmatpush1.msra.mxu0 0.0
        %1725 = vmatprep.subr.mxu0 0.0
        %1726 = vmatpush1.msra.mxu0 0.0
        %1727 = vmatprep.subr.mxu0 0.0
        %1728 = vmatpush1.msra.mxu0 0.0
        %1729 = vmatprep.subr.mxu0 0.0
        %1730 = vmatpush1.msra.mxu0 0.0
        %1731 = vmatprep.subr.mxu0 0.0
        %1732 = vmatpush1.msra.mxu0 0.0
        %1733 = vmatprep.subr.mxu0 0.0
        %1734 = vmatpush1.msra.mxu0 0.0
        %1735 = vmatprep.subr.mxu0 0.0
        %1736 = vmatpush1.msra.mxu0 0.0
        %1737 = vmatprep.subr.mxu0 0.0
        %1738 = vmatpush1.msra.mxu0 0.0
        %1739 = vmatprep.subr.mxu0 0.0
        %1740 = vmatpush1.msra.mxu0 0.0
        %1741 = vmatprep.subr.mxu0 0.0
        %1742 = vmatpush1.msra.mxu0 0.0
        %1743 = vmatprep.subr.mxu0 0.0
        %1744 = vmatpush1.msra.mxu0 0.0
        %1745 = vmatprep.subr.mxu0 0.0
        %1746 = vmatpush1.msra.mxu0 0.0
        %1747 = vmatprep.subr.mxu0 0.0
        %1748 = vmatpush1.msra.mxu0 0.0
        %1749 = vmatprep.subr.mxu0 0.0
        %1750 = vmatpush1.msra.mxu0 0.0
        %1751 = vmatprep.subr.mxu0 0.0
        %1752 = vmatpush1.msra.mxu0 0.0
        %1753 = vmatprep.subr.mxu0 0.0
        %1754 = vmatpush1.msra.mxu0 0.0
        %1755 = vmatprep.mubr.f32.mxu0 0.0
        %1756 = vmatmul.mubr.f32.gmra.mrb[0].mxu0 %v1689
        %v1757 = vpop.f32.mrb[0].mxu0
        %v1758 = vadd.f32 0.0, %v1757
        %v1759 = vpop.f32.mrb[0].mxu0
        %1760 = vdwg.mxu0
        %1762 = vrot.lane.b32.xlu0 %v1758, 16
        %v1763 = vpop.permute.xlu0 %1762
        %vm1765 = vcmask 195712
        %1766 = vst.msk [vmem:[#allocation2] sm:$0xff] %vm1765, %v1763
        %1767 = vrot.lane.b32.xlu0 %v759, 104
        %v1768 = vpop.permute.xlu0 %1767
        %1769 = vrot.lane.b32.xlu0 %v843, 104
        %v1770 = vpop.permute.xlu0 %1769
        %v1771 = vsel %vm930, %v1768, 0
        %v1773 = vsel %vm930, %v1770, 0
        %1775 = vmatprep.subr.mxu0 0.0
        %1776 = vmatpush1.xpose.msra.mxu0 %v1773
        %1777 = vmatprep.subr.mxu0 0.0
        %1778 = vmatpush1.xpose.msra.mxu0 0.0
        %1779 = vmatprep.subr.mxu0 0.0
        %1780 = vmatpush1.xpose.msra.mxu0 0.0
        %1781 = vmatprep.subr.mxu0 0.0
        %1782 = vmatpush1.xpose.msra.mxu0 0.0
        %1783 = vmatprep.subr.mxu0 0.0
        %1784 = vmatpush1.xpose.msra.mxu0 0.0
        %1785 = vmatprep.subr.mxu0 0.0
        %1786 = vmatpush1.xpose.msra.mxu0 0.0
        %1787 = vmatprep.subr.mxu0 0.0
        %1788 = vmatpush1.xpose.msra.mxu0 0.0
        %1789 = vmatprep.subr.mxu0 0.0
        %1790 = vmatpush1.xpose.msra.mxu0 0.0
        %1791 = vmatprep.subr.mxu0 0.0
        %1792 = vmatpush1.xpose.msra.mxu0 0.0
        %1793 = vmatprep.subr.mxu0 0.0
        %1794 = vmatpush1.xpose.msra.mxu0 0.0
        %1795 = vmatprep.subr.mxu0 0.0
        %1796 = vmatpush1.xpose.msra.mxu0 0.0
        %1797 = vmatprep.subr.mxu0 0.0
        %1798 = vmatpush1.xpose.msra.mxu0 0.0
        %1799 = vmatprep.subr.mxu0 0.0
        %1800 = vmatpush1.xpose.msra.mxu0 0.0
        %1801 = vmatprep.subr.mxu0 0.0
        %1802 = vmatpush1.xpose.msra.mxu0 0.0
        %1803 = vmatprep.subr.mxu0 0.0
        %1804 = vmatpush1.xpose.msra.mxu0 0.0
        %1805 = vmatprep.subr.mxu0 0.0
        %1806 = vmatpush1.xpose.msra.mxu0 0.0
        %1807 = vmatprep.subr.mxu0 0.0
        %1808 = vmatpush1.xpose.msra.mxu0 0.0
        %1809 = vmatprep.subr.mxu0 0.0
        %1810 = vmatpush1.xpose.msra.mxu0 0.0
        %1811 = vmatprep.subr.mxu0 0.0
        %1812 = vmatpush1.xpose.msra.mxu0 0.0
        %1813 = vmatprep.subr.mxu0 0.0
        %1814 = vmatpush1.xpose.msra.mxu0 0.0
        %1815 = vmatprep.subr.mxu0 0.0
        %1816 = vmatpush1.xpose.msra.mxu0 0.0
        %1817 = vmatprep.subr.mxu0 0.0
        %1818 = vmatpush1.xpose.msra.mxu0 0.0
        %1819 = vmatprep.subr.mxu0 0.0
        %1820 = vmatpush1.xpose.msra.mxu0 0.0
        %1821 = vmatprep.subr.mxu0 0.0
        %1822 = vmatpush1.xpose.msra.mxu0 0.0
        %1823 = vmatprep.subr.mxu0 0.0
        %1824 = vmatpush1.xpose.msra.mxu0 0.0
        %1825 = vmatprep.subr.mxu0 0.0
        %1826 = vmatpush1.xpose.msra.mxu0 0.0
        %1827 = vmatprep.subr.mxu0 0.0
        %1828 = vmatpush1.xpose.msra.mxu0 0.0
        %1829 = vmatprep.subr.mxu0 0.0
        %1830 = vmatpush1.xpose.msra.mxu0 0.0
        %1831 = vmatprep.subr.mxu0 0.0
        %1832 = vmatpush1.xpose.msra.mxu0 0.0
        %1833 = vmatprep.subr.mxu0 0.0
        %1834 = vmatpush1.xpose.msra.mxu0 0.0
        %1835 = vmatprep.subr.mxu0 0.0
        %1836 = vmatpush1.xpose.msra.mxu0 0.0
        %1837 = vmatprep.subr.mxu0 0.0
        %1838 = vmatpush1.xpose.msra.mxu0 0.0
        %1839 = vmatprep.mubr.f32.mxu0 0.0
        %1840 = vmatmul.mubr.f32.gmra.mrb[0].mxu0 %v1771
        %v1841 = vpop.f32.mrb[0].mxu0
        %v1842 = vadd.f32 0.0, %v1841
        %v1843 = vpop.f32.mrb[0].mxu0
        %1844 = vdwg.mxu0
        %v1845 = vmul.f32 %v1842, 0.35355338
        %v1846 = vsel %vm664, %v1845, -1e+32
        %v1847 = vsel %vm930, %v1846, -inf
        %1848 = vmax.xlane.f32.xlu0 %v1847
        %v1849 = vpop.xlane.xlu0 %1848
        %v1850 = vsub.f32 %v1846, %v1849
        %v1851 = vmul.f32 %v1850, 1.442695
        %v1852 = vpow.pop %v1851
        %v1853 = vsel %vm930, %v1852, 0.0
        %1854 = vadd.xlane.f32.xlu0 %v1853
        %v1855 = vpop.xlane.xlu0 %1854
        %v1856 = vrcp.pop %v1855
        %v1857 = vmul.f32 %v1852, %v1856
        %v1858 = vmul.f32 %v1857, %v663
        %v1860 = vsel %vm930, %v1858, 0
        %1862 = vmatprep.subr.mxu0 0.0
        %1863 = vmatpush1.msra.mxu0 %v671
        %1864 = vmatprep.subr.mxu0 0.0
        %1865 = vmatpush1.msra.mxu0 0.0
        %1866 = vmatprep.subr.mxu0 0.0
        %1867 = vmatpush1.msra.mxu0 0.0
        %1868 = vmatprep.subr.mxu0 0.0
        %1869 = vmatpush1.msra.mxu0 0.0
        %1870 = vmatprep.subr.mxu0 0.0
        %1871 = vmatpush1.msra.mxu0 0.0
        %1872 = vmatprep.subr.mxu0 0.0
        %1873 = vmatpush1.msra.mxu0 0.0
        %1874 = vmatprep.subr.mxu0 0.0
        %1875 = vmatpush1.msra.mxu0 0.0
        %1876 = vmatprep.subr.mxu0 0.0
        %1877 = vmatpush1.msra.mxu0 0.0
        %1878 = vmatprep.subr.mxu0 0.0
        %1879 = vmatpush1.msra.mxu0 0.0
        %1880 = vmatprep.subr.mxu0 0.0
        %1881 = vmatpush1.msra.mxu0 0.0
        %1882 = vmatprep.subr.mxu0 0.0
        %1883 = vmatpush1.msra.mxu0 0.0
        %1884 = vmatprep.subr.mxu0 0.0
        %1885 = vmatpush1.msra.mxu0 0.0
        %1886 = vmatprep.subr.mxu0 0.0
        %1887 = vmatpush1.msra.mxu0 0.0
        %1888 = vmatprep.subr.mxu0 0.0
        %1889 = vmatpush1.msra.mxu0 0.0
        %1890 = vmatprep.subr.mxu0 0.0
        %1891 = vmatpush1.msra.mxu0 0.0
        %1892 = vmatprep.subr.mxu0 0.0
        %1893 = vmatpush1.msra.mxu0 0.0
        %1894 = vmatprep.subr.mxu0 0.0
        %1895 = vmatpush1.msra.mxu0 0.0
        %1896 = vmatprep.subr.mxu0 0.0
        %1897 = vmatpush1.msra.mxu0 0.0
        %1898 = vmatprep.subr.mxu0 0.0
        %1899 = vmatpush1.msra.mxu0 0.0
        %1900 = vmatprep.subr.mxu0 0.0
        %1901 = vmatpush1.msra.mxu0 0.0
        %1902 = vmatprep.subr.mxu0 0.0
        %1903 = vmatpush1.msra.mxu0 0.0
        %1904 = vmatprep.subr.mxu0 0.0
        %1905 = vmatpush1.msra.mxu0 0.0
        %1906 = vmatprep.subr.mxu0 0.0
        %1907 = vmatpush1.msra.mxu0 0.0
        %1908 = vmatprep.subr.mxu0 0.0
        %1909 = vmatpush1.msra.mxu0 0.0
        %1910 = vmatprep.subr.mxu0 0.0
        %1911 = vmatpush1.msra.mxu0 0.0
        %1912 = vmatprep.subr.mxu0 0.0
        %1913 = vmatpush1.msra.mxu0 0.0
        %1914 = vmatprep.subr.mxu0 0.0
        %1915 = vmatpush1.msra.mxu0 0.0
        %1916 = vmatprep.subr.mxu0 0.0
        %1917 = vmatpush1.msra.mxu0 0.0
        %1918 = vmatprep.subr.mxu0 0.0
        %1919 = vmatpush1.msra.mxu0 0.0
        %1920 = vmatprep.subr.mxu0 0.0
        %1921 = vmatpush1.msra.mxu0 0.0
        %1922 = vmatprep.subr.mxu0 0.0
        %1923 = vmatpush1.msra.mxu0 0.0
        %1924 = vmatprep.subr.mxu0 0.0
        %1925 = vmatpush1.msra.mxu0 0.0
        %1926 = vmatprep.mubr.f32.mxu0 0.0
        %1927 = vmatmul.mubr.f32.gmra.mrb[0].mxu0 %v1860
        %v1928 = vpop.f32.mrb[0].mxu0
        %v1929 = vadd.f32 0.0, %v1928
        %v1930 = vpop.f32.mrb[0].mxu0
        %1931 = vdwg.mxu0
        %v1932 = vsel %vm930, %v1858, 0.0
        %1933 = vadd.xlane.f32.xlu0 %v1932
        %v1934 = vpop.xlane.xlu0 %1933
        %v1935 = vsub.f32 %v1934, %v1929
        %v1936 = vmul.f32 %v1935, %v676
        %v1937 = vmax.f32 %v1936, 0.0
        %v1938 = vrsqrt.pop %v1937
        %v1939 = vmul.f32 %v1937, %v1938
        %vm1940 = vcmp.eq.f32.partialorder %v1937, inf
        %v1941 = vsel %vm1940, %v1937, %v1939
        %vm1942 = vcmp.eq.f32.partialorder %v1937, 0.0
        %v1943 = vand.u32 %v1937, 2147483648
        %v1944 = vsel %vm1942, %v1943, %v1941
        %s1945 = sld [smem:[#allocation19 + $0x3]]
        %v1946 = vstv %s1945
        %v1947 = vmul.f32 %v1944, %v1946
        %v1948 = vmul.f32 %v1947, 1.442695
        %v1949 = vpow.pop %v1948
        %v1950 = vmax.f32 %v1949, 1e-05
        %v1951 = vmin.f32 %v1950, 100000.0
        %v1952 = vmul.f32 %v1845, %v1951
        %v1953 = vsel %vm664, %v1952, -1e+32
        %v1954 = vsel %vm930, %v1953, -inf
        %1955 = vmax.xlane.f32.xlu0 %v1954
        %v1956 = vpop.xlane.xlu0 %1955
        %v1957 = vsub.f32 %v1953, %v1956
        %v1958 = vmul.f32 %v1957, 1.442695
        %v1959 = vpow.pop %v1958
        %v1960 = vsel %vm930, %v1959, 0.0
        %1961 = vadd.xlane.f32.xlu0 %v1960
        %v1962 = vpop.xlane.xlu0 %1961
        %v1963 = vrcp.pop %v1962
        %v1964 = vmul.f32 %v1959, %v1963
        %s1965 = scalar_lea.vmem %s659, 24 [#allocation21]
        %1966 = vst.msk [vmem:[%s1965] sm:$0xff] %vm930, %v1964
        %1967 = vrot.lane.b32.xlu0 %v927, 104
        %v1968 = vpop.permute.xlu0 %1967
        %v1971 = vsel %vm930, %v1964, 0
        %1973 = vmatprep.subr.mxu0 0.0
        %1974 = vmatpush1.msra.mxu0 %v1968
        %1975 = vmatprep.subr.mxu0 0.0
        %1976 = vmatpush1.msra.mxu0 0.0
        %1977 = vmatprep.subr.mxu0 0.0
        %1978 = vmatpush1.msra.mxu0 0.0
        %1979 = vmatprep.subr.mxu0 0.0
        %1980 = vmatpush1.msra.mxu0 0.0
        %1981 = vmatprep.subr.mxu0 0.0
        %1982 = vmatpush1.msra.mxu0 0.0
        %1983 = vmatprep.subr.mxu0 0.0
        %1984 = vmatpush1.msra.mxu0 0.0
        %1985 = vmatprep.subr.mxu0 0.0
        %1986 = vmatpush1.msra.mxu0 0.0
        %1987 = vmatprep.subr.mxu0 0.0
        %1988 = vmatpush1.msra.mxu0 0.0
        %1989 = vmatprep.subr.mxu0 0.0
        %1990 = vmatpush1.msra.mxu0 0.0
        %1991 = vmatprep.subr.mxu0 0.0
        %1992 = vmatpush1.msra.mxu0 0.0
        %1993 = vmatprep.subr.mxu0 0.0
        %1994 = vmatpush1.msra.mxu0 0.0
        %1995 = vmatprep.subr.mxu0 0.0
        %1996 = vmatpush1.msra.mxu0 0.0
        %1997 = vmatprep.subr.mxu0 0.0
        %1998 = vmatpush1.msra.mxu0 0.0
        %1999 = vmatprep.subr.mxu0 0.0
        %2000 = vmatpush1.msra.mxu0 0.0
        %2001 = vmatprep.subr.mxu0 0.0
        %2002 = vmatpush1.msra.mxu0 0.0
        %2003 = vmatprep.subr.mxu0 0.0
        %2004 = vmatpush1.msra.mxu0 0.0
        %2005 = vmatprep.subr.mxu0 0.0
        %2006 = vmatpush1.msra.mxu0 0.0
        %2007 = vmatprep.subr.mxu0 0.0
        %2008 = vmatpush1.msra.mxu0 0.0
        %2009 = vmatprep.subr.mxu0 0.0
        %2010 = vmatpush1.msra.mxu0 0.0
        %2011 = vmatprep.subr.mxu0 0.0
        %2012 = vmatpush1.msra.mxu0 0.0
        %2013 = vmatprep.subr.mxu0 0.0
        %2014 = vmatpush1.msra.mxu0 0.0
        %2015 = vmatprep.subr.mxu0 0.0
        %2016 = vmatpush1.msra.mxu0 0.0
        %2017 = vmatprep.subr.mxu0 0.0
        %2018 = vmatpush1.msra.mxu0 0.0
        %2019 = vmatprep.subr.mxu0 0.0
        %2020 = vmatpush1.msra.mxu0 0.0
        %2021 = vmatprep.subr.mxu0 0.0
        %2022 = vmatpush1.msra.mxu0 0.0
        %2023 = vmatprep.subr.mxu0 0.0
        %2024 = vmatpush1.msra.mxu0 0.0
        %2025 = vmatprep.subr.mxu0 0.0
        %2026 = vmatpush1.msra.mxu0 0.0
        %2027 = vmatprep.subr.mxu0 0.0
        %2028 = vmatpush1.msra.mxu0 0.0
        %2029 = vmatprep.subr.mxu0 0.0
        %2030 = vmatpush1.msra.mxu0 0.0
        %2031 = vmatprep.subr.mxu0 0.0
        %2032 = vmatpush1.msra.mxu0 0.0
        %2033 = vmatprep.subr.mxu0 0.0
        %2034 = vmatpush1.msra.mxu0 0.0
        %2035 = vmatprep.subr.mxu0 0.0
        %2036 = vmatpush1.msra.mxu0 0.0
        %2037 = vmatprep.mubr.f32.mxu0 0.0
        %2038 = vmatmul.mubr.f32.gmra.mrb[0].mxu0 %v1971
        %v2039 = vpop.f32.mrb[0].mxu0
        %v2040 = vadd.f32 0.0, %v2039
        %v2041 = vpop.f32.mrb[0].mxu0
        %2042 = vdwg.mxu0
        %2044 = vrot.lane.b32.xlu0 %v2040, 24
        %v2045 = vpop.permute.xlu0 %2044
        %vm2047 = vcmask 261312
        %2048 = vst.msk [vmem:[#allocation2] sm:$0xff] %vm2047, %v2045
        %v2049 = vld [vmem:[#allocation2] sm:$0xff]
        %v2050 = vld [vmem:[%s9] sm:$0xff]
        %v2051 = vld [vmem:[%s9 + $0x8] sm:$0xff]
        %v2052 = vld [vmem:[%s9 + $0x10] sm:$0xff]
        %v2053 = vld [vmem:[%s9 + $0x18] sm:$0xff]
        %v2054 = vld [vmem:[#allocation18] sm:$0x1]
        %v2056 = vlaneseq
        %v2057 = vshrl.u32 %v2056, 7
        %v2058 = vsub.s32 0, %v2057
        %v2059 = vrot.slane %v2054, %v2058
        %v2062 = vsel %vm688, %v2049, 0
        %2064 = vmatprep.subr.mxu0 0.0
        %2065 = vmatpush1.msra.mxu0 %v2050
        %2066 = vmatprep.subr.mxu0 0.0
        %2067 = vmatpush1.msra.mxu0 %v2051
        %2068 = vmatprep.subr.mxu0 0.0
        %2069 = vmatpush1.msra.mxu0 %v2052
        %2070 = vmatprep.subr.mxu0 0.0
        %2071 = vmatpush1.msra.mxu0 %v2053
        %2072 = vmatprep.subr.mxu0 0.0
        %2073 = vmatpush1.msra.mxu0 0.0
        %2074 = vmatprep.subr.mxu0 0.0
        %2075 = vmatpush1.msra.mxu0 0.0
        %2076 = vmatprep.subr.mxu0 0.0
        %2077 = vmatpush1.msra.mxu0 0.0
        %2078 = vmatprep.subr.mxu0 0.0
        %2079 = vmatpush1.msra.mxu0 0.0
        %2080 = vmatprep.subr.mxu0 0.0
        %2081 = vmatpush1.msra.mxu0 0.0
        %2082 = vmatprep.subr.mxu0 0.0
        %2083 = vmatpush1.msra.mxu0 0.0
        %2084 = vmatprep.subr.mxu0 0.0
        %2085 = vmatpush1.msra.mxu0 0.0
        %2086 = vmatprep.subr.mxu0 0.0
        %2087 = vmatpush1.msra.mxu0 0.0
        %2088 = vmatprep.subr.mxu0 0.0
        %2089 = vmatpush1.msra.mxu0 0.0
        %2090 = vmatprep.subr.mxu0 0.0
        %2091 = vmatpush1.msra.mxu0 0.0
        %2092 = vmatprep.subr.mxu0 0.0
        %2093 = vmatpush1.msra.mxu0 0.0
        %2094 = vmatprep.subr.mxu0 0.0
        %2095 = vmatpush1.msra.mxu0 0.0
        %2096 = vmatprep.subr.mxu0 0.0
        %2097 = vmatpush1.msra.mxu0 0.0
        %2098 = vmatprep.subr.mxu0 0.0
        %2099 = vmatpush1.msra.mxu0 0.0
        %2100 = vmatprep.subr.mxu0 0.0
        %2101 = vmatpush1.msra.mxu0 0.0
        %2102 = vmatprep.subr.mxu0 0.0
        %2103 = vmatpush1.msra.mxu0 0.0
        %2104 = vmatprep.subr.mxu0 0.0
        %2105 = vmatpush1.msra.mxu0 0.0
        %2106 = vmatprep.subr.mxu0 0.0
        %2107 = vmatpush1.msra.mxu0 0.0
        %2108 = vmatprep.subr.mxu0 0.0
        %2109 = vmatpush1.msra.mxu0 0.0
        %2110 = vmatprep.subr.mxu0 0.0
        %2111 = vmatpush1.msra.mxu0 0.0
        %2112 = vmatprep.subr.mxu0 0.0
        %2113 = vmatpush1.msra.mxu0 0.0
        %2114 = vmatprep.subr.mxu0 0.0
        %2115 = vmatpush1.msra.mxu0 0.0
        %2116 = vmatprep.subr.mxu0 0.0
        %2117 = vmatpush1.msra.mxu0 0.0
        %2118 = vmatprep.subr.mxu0 0.0
        %2119 = vmatpush1.msra.mxu0 0.0
        %2120 = vmatprep.subr.mxu0 0.0
        %2121 = vmatpush1.msra.mxu0 0.0
        %2122 = vmatprep.subr.mxu0 0.0
        %2123 = vmatpush1.msra.mxu0 0.0
        %2124 = vmatprep.subr.mxu0 0.0
        %2125 = vmatpush1.msra.mxu0 0.0
        %2126 = vmatprep.subr.mxu0 0.0
        %2127 = vmatpush1.msra.mxu0 0.0
        %2128 = vmatprep.mubr.f32.mxu0 0.0
        %2129 = vmatmul.mubr.f32.gmra.mrb[0].mxu0 %v2062
        %v2130 = vpop.f32.mrb[0].mxu0
        %v2131 = vadd.f32 %v2059, %v2130
        %v2132 = vpop.f32.mrb[0].mxu0
        %2133 = vdwg.mxu0
        %2134 = vst.msk [vmem:[%s652] sm:$0xff] %vm688, %v2131
        %s2135 = sand.u32 %s338, 1
        %s2136 = scalar_lea.sflag [#allocation5], %s2135
        %s2137 = sand.u32 %s338, 1
        %s2138 = smul.addr %s2137, 8
        %s2139 = scalar_lea.vmem [#allocation20], %s2138
        %s2140 = sand.u32 %s364, 1
        %s2141 = scalar_lea.sflag [#allocation22], %s2140
        %s2142 = sand.u32 %s364, 1
        %s2143 = smul.addr %s2142, 32
        %s2144 = scalar_lea.vmem [#allocation21], %s2143
        // Predicated region
        $region113: #{tpu_custom_call.1} parent=71 // pred_check
          %p2145 = pneg %p348
        $region114: #{tpu_custom_call.1} parent=71 // pred_check_branch
          %2147 = sbr.rel (%p2145) target = $region116
        $region115: #{tpu_custom_call.1} parent=71 // pred_region
          %s2149 = ssub.s32 128, 128
          %2150 = vsyncadd %s2136, %s2149
          %s2151 = smul.addr %s42, 128
          %s2152 = scalar_lea.hbm %s13, %s2151
          %s2154 = sshll.u32 %s2139, 4
          %s2155 = int_to_ptr.vmem [resolvable:$true] %s2154
          %2157 = dma.vmem_to_hbm [thread:$0]  %s2155, 128, %s2152, %s2136
        $region116: #{tpu_custom_call.1} parent=71 // pred_fallthru
          _
        // Predicated region
        $region117: #{tpu_custom_call.1} parent=71 // pred_check
          %p2158 = pneg %p374
        $region118: #{tpu_custom_call.1} parent=71 // pred_check_branch
          %2160 = sbr.rel (%p2158) target = $region120
        $region119: #{tpu_custom_call.1} parent=71 // pred_region
          %s2162 = ssub.s32 512, 512
          %2163 = vsyncadd %s2141, %s2162
          %s2164 = smul.addr %s42, 4
          %s2165 = smul.addr %s2164, 128
          %s2166 = scalar_lea.hbm %s14, %s2165
          %s2167 = sshll.u32 %s2144, 4
          %s2168 = int_to_ptr.vmem [resolvable:$true] %s2167
          %2173 = dma.vmem_to_hbm [thread:$0]  %s2168, 512, %s2166, %s2141, 128, 128, 8
        $region120: #{tpu_custom_call.1} parent=71 // pred_fallthru
          _
      $region72: #{tpu_custom_call.1} parent=5 // pred_fallthru
        _
      %p2174 = scmp.le.s32.totalorder 2, %s37
      // Predicated region
      $region121: #{tpu_custom_call.1} parent=5 // pred_check
        %p2175 = pneg %p2174
      $region122: #{tpu_custom_call.1} parent=5 // pred_check_branch
        %2177 = sbr.rel (%p2175) target = $region124
      $region123: #{tpu_custom_call.1} parent=5 // pred_region
        %s2178 = ssub.s32 %s37, 2
        // Predicated region
        $region125: #{tpu_custom_call.1} parent=123 // pred_check
          %p2179 = pneg %p354
        $region126: #{tpu_custom_call.1} parent=123 // pred_check_branch
          %2181 = sbr.rel (%p2179) target = $region128
        $region127: #{tpu_custom_call.1} parent=123 // pred_region
          %s2182 = sand.u32 %s339, 1
          %s2183 = scalar_lea.sflag [#allocation5], %s2182
          %s2184 = sand.u32 %s339, 1
          %s2185 = smul.addr %s2184, 8
          %s2186 = scalar_lea.vmem [#allocation20], %s2185
          %2187 = dma.done %s2183, 128
        $region128: #{tpu_custom_call.1} parent=123 // pred_fallthru
          _
        // Predicated region
        $region129: #{tpu_custom_call.1} parent=123 // pred_check
          %p2188 = pneg %p380
        $region130: #{tpu_custom_call.1} parent=123 // pred_check_branch
          %2190 = sbr.rel (%p2188) target = $region132
        $region131: #{tpu_custom_call.1} parent=123 // pred_region
          %s2191 = sand.u32 %s365, 1
          %s2192 = scalar_lea.sflag [#allocation22], %s2191
          %s2193 = sand.u32 %s365, 1
          %s2194 = smul.addr %s2193, 32
          %s2195 = scalar_lea.vmem [#allocation21], %s2194
          %2196 = dma.done %s2192, 512
        $region132: #{tpu_custom_call.1} parent=123 // pred_fallthru
          _
      $region124: #{tpu_custom_call.1} parent=5 // pred_fallthru
        _
    $region6: #{tpu_custom_call.1} parent=1 // loop_footer
      %s41 = sadd.s32 1, %s37
    $region7: #{tpu_custom_call.1} parent=1 // loop_footer_branch
      %36 = sbr.rel target = $region3
    $region8: #{tpu_custom_call.1} parent=1 // loop_exit
      _
    %2197 = vsyncpa [#allocation4], 1
    %s2198 = scalar_lea.sflag [#allocation4], 1
    %2199 = vsyncpa %s2198, 1
    %2200 = vsyncpa [#allocation8], 1
    %s2201 = scalar_lea.sflag [#allocation8], 1
    %2202 = vsyncpa %s2201, 1
    %2203 = vsyncpa [#allocation11], 1
    %2204 = vsyncpa [#allocation14], 1
    %2205 = vsyncpa [#allocation17], 1
    %2206 = vsyncpa [#allocation5], 1
    %s2207 = scalar_lea.sflag [#allocation5], 1
    %2208 = vsyncpa %s2207, 1
    %2209 = vsyncpa [#allocation22], 1
    %s2210 = scalar_lea.sflag [#allocation22], 1
    %2211 = vsyncpa %s2210, 1
    %2212 = vsyncpa [#allocation6], 1
    %s2213 = scalar_lea.sflag [#allocation6], 1
    %2214 = vsyncpa %s2213, 1

</llo_original>
